<compile_context>
chip_gen: v7x
topology: tpu7x:2x2x1
jax: 0.10.0
libtpu: 0.0.40
codegen_flags: <defaults>
</compile_context>

<pallas_src>
import numpy as np
import jax
import jax.numpy as jnp
from jax import lax
from jax.experimental import pallas as pl
from jax.experimental.pallas import tpu as pltpu

F32 = jnp.float32
BF16 = jnp.bfloat16
_VMEM = pl.BlockSpec(memory_space=pltpu.MemorySpace.VMEM)


def _round_up(x, m):
    return ((x + m - 1) // m) * m


def _vmem_limit():
    """Generation-aware scoped-VMEM limit (~48 MiB on v7x, ~100 MiB on v5e/v6e)."""
    try:
        cap = int(getattr(pltpu.get_tpu_info(), 'vmem_capacity_bytes', 64 * 2 ** 20))
    except Exception:
        cap = 64 * 2 ** 20
    return int(max(32 * 2 ** 20, min(cap - 16 * 2 ** 20, 100 * 2 ** 20)))


# --------------------------------------------------------------------------
# Kernel 1a: RGCNConv -> HypergraphConv (use_attention=False)
#   D^-1 / B^-1 folded into the incidence matrices on the host.
# --------------------------------------------------------------------------
def _rgcn_hyper_kernel(x_ref, arel_ref, hincs_ref, hincts_ref, wall_ref,
                       brgcn_ref, bhg_ref, out_ref):
    H = out_ref.shape[1]
    R = arel_ref.shape[0]

    # RGCNConv: x @ [W_root | W_0 | ... | W_{R-1}] in one wide MXU matmul,
    # per-relation scatter-mean already row-normalized into a_rel on the host.
    xb = x_ref[...].astype(BF16)
    xw = jnp.dot(xb, wall_ref[...], preferred_element_type=F32)       # [N,(R+1)H]
    out1 = xw[:, :H] + brgcn_ref[...]
    for r in range(R):                                                # static, small R
        out1 = out1 + jnp.dot(arel_ref[r],
                              xw[:, (r + 1) * H:(r + 2) * H].astype(BF16),
                              preferred_element_type=F32)

    # HypergraphConv: node -> hyperedge -> node (two plain MXU matmuls).
    ef = jnp.dot(hincts_ref[...], out1.astype(BF16), preferred_element_type=F32)
    nf = jnp.dot(hincs_ref[...], ef.astype(BF16), preferred_element_type=F32)
    out2 = nf + bhg_ref[...]
    out2 = jnp.where(out2 >= 0, out2, 0.01 * out2)                    # LeakyReLU(0.01)
    out_ref[...] = out2.astype(out_ref.dtype)


def run_rgcn_hyper(x_pad, struct, kp):
    n_pad = x_pad.shape[0]
    h_pad = kp['rgcn_b'].shape[1]
    # TODO(synk): for very large N split this into row-tiled (xw / relation /
    # hyperedge) kernels; the hyperedge reduction is global so a single-pass
    # row grid is not possible inside one fused kernel.
    return pl.pallas_call(
        _rgcn_hyper_kernel,
        out_shape=jax.ShapeDtypeStruct((n_pad, h_pad), BF16),
        in_specs=[_VMEM] * 7,
        out_specs=_VMEM,
        compiler_params=pltpu.CompilerParams(vmem_limit_bytes=_vmem_limit()),
    )(x_pad, struct['a_rel'], struct['hinc_s'], struct['hinct_s'],
      kp['w_all'], kp['rgcn_b'], kp['hg_b'])


# --------------------------------------------------------------------------
# Kernel 1b: highConv, row-tiled over output-node blocks (grid, "parallel").
#   The [N,N] tanh-gate tensor only ever exists as a [tn,N] block.
# --------------------------------------------------------------------------
def _highconv_kernel(adj_ref, x2b_ref, x2f_ref, wgi_ref, wgj_ref, bg_ref, out_ref):
    x2b = x2b_ref[...].astype(F32)                                    # [tn, H] target rows
    x2f = x2f_ref[...].astype(F32)                                    # [N, H]  source rows
    ai = jnp.sum(x2b * wgi_ref[...], axis=1, keepdims=True)           # gate, x_i half
    aj = jnp.sum(x2f * wgj_ref[...], axis=1, keepdims=True)           # gate, x_j half
    alpha = jnp.tanh(ai + jnp.transpose(aj) + bg_ref[...])            # [tn, N]
    coef = (adj_ref[...].astype(F32) * alpha).astype(BF16)            # deg^-1/2 folded on host
    out_ref[...] = jnp.dot(coef, x2f_ref[...],
                           preferred_element_type=F32).astype(out_ref.dtype)


def run_highconv(out2, struct, kp):
    n_pad, h_pad = out2.shape
    tn = min(128, n_pad)
    return pl.pallas_call(
        _highconv_kernel,
        out_shape=jax.ShapeDtypeStruct((n_pad, h_pad), BF16),
        grid=(n_pad // tn,),
        in_specs=[
            pl.BlockSpec((tn, n_pad), lambda i: (i, 0)),              # adjacency row block
            pl.BlockSpec((tn, h_pad), lambda i: (i, 0)),              # node feats, target rows
            pl.BlockSpec((n_pad, h_pad), lambda i: (0, 0)),           # node feats, all rows
            pl.BlockSpec((1, h_pad), lambda i: (0, 0)),
            pl.BlockSpec((1, h_pad), lambda i: (0, 0)),
            pl.BlockSpec((1, 1), lambda i: (0, 0)),
        ],
        out_specs=pl.BlockSpec((tn, h_pad), lambda i: (i, 0)),
        compiler_params=pltpu.CompilerParams(
            dimension_semantics=("parallel",),
            vmem_limit_bytes=_vmem_limit()),
    )(struct['adj_norm'], out2, out2, kp['gate_wi'], kp['gate_wj'], kp['gate_b'])


# --------------------------------------------------------------------------
# Kernel 2: one bidirectional GRU layer (PyTorch gate order r, z, n), h0 = 0.
#   grid=(2,) over direction; gates fused; input projection is ONE 2-D matmul;
#   directions write lane-concatenated into a single [T, Bp, 2H] bf16 output.
# --------------------------------------------------------------------------
def _bigru_layer_kernel(x_ref, wi_ref, wh_ref, bx_ref, bhn_ref, out_ref,
                        h_scr, xp_scr):
    d = pl.program_id(0)                 # 0 = forward, 1 = backward direction
    T, Bp, H = out_ref.shape

    # Hoisted input projection for ALL timesteps: one wide bf16 MXU matmul,
    # (b_ir+b_hr | b_iz+b_hz | b_in) pre-folded into bx on the host.
    xp_scr[...] = jnp.dot(x_ref[...].astype(BF16), wi_ref[...],
                          preferred_element_type=F32) + bx_ref[...]
    h_scr[...] = jnp.zeros_like(h_scr)
    wh = wh_ref[...]                     # bf16 [H, 3H], hoisted out of the loop
    bhn = jnp.broadcast_to(bhn_ref[...], (Bp, H))   # hoisted broadcast

    def step(s, carry):
        t = jnp.where(d == 0, s, T - 1 - s)
        row = pl.multiple_of(t * Bp, Bp)
        gi = xp_scr[pl.ds(row, Bp), :]                                # [Bp, 3H]
        h = h_scr[...]
        gh = jnp.dot(h.astype(BF16), wh, preferred_element_type=F32)  # [Bp, 3H]
        r = jax.nn.sigmoid(gi[:, :H] + gh[:, :H])
        z = jax.nn.sigmoid(gi[:, H:2 * H] + gh[:, H:2 * H])
        n = jnp.tanh(gi[:, 2 * H:] + r * (gh[:, 2 * H:] + bhn))
        hn = (1.0 - z) * n + z * h
        h_scr[...] = hn
        out_ref[t] = hn.astype(out_ref.dtype)
        return carry

    lax.fori_loop(0, T, step, 0, unroll=True if T <= 64 else 8)


def run_bigru_layer(x, lp):
    T, Bp, In = x.shape
    H = lp['wh'].shape[1]
    x2d = x.reshape(T * Bp, In)          # free relayout on the wrapper side
    return pl.pallas_call(
        _bigru_layer_kernel,
        out_shape=jax.ShapeDtypeStruct((T, Bp, 2 * H), BF16),
        grid=(2,),
        in_specs=[
            pl.BlockSpec((T * Bp, In), lambda d: (0, 0)),
            pl.BlockSpec((None, In, 3 * H), lambda d: (d, 0, 0)),
            pl.BlockSpec((None, H, 3 * H), lambda d: (d, 0, 0)),
            pl.BlockSpec((None, 1, 3 * H), lambda d: (d, 0, 0)),
            pl.BlockSpec((None, 1, H), lambda d: (d, 0, 0)),
        ],
        out_specs=pl.BlockSpec((T, Bp, H), lambda d: (0, 0, d)),   # lane-concat fwd|bwd
        scratch_shapes=[pltpu.VMEM((Bp, H), F32),
                        pltpu.VMEM((T * Bp, 3 * H), F32)],
        compiler_params=pltpu.CompilerParams(
            dimension_semantics=("parallel",),     # directions -> 2 TCs on v7x
            vmem_limit_bytes=_vmem_limit()),
    )(x2d, lp['wi'], lp['wh'], lp['bx'], lp['bhn'])


def run_bigru(x_seq, gru_layers):
    """2-layer bidirectional GRU (eval mode -> no inter-layer dropout)."""
    # TODO(synk): pack_padded_sequence is not replicated; like the reference
    # unpacked GRU, padded (zero) timesteps inside max_len are processed.
    h = x_seq.astype(BF16)
    for lp in gru_layers:
        h = run_bigru_layer(h, lp)       # [T, Bp, 2H] bf16, fwd|bwd lane-concat
    return h


# --------------------------------------------------------------------------
# Kernel 3: MatchingAttention('general2') over every timestep + Linear + ReLU,
#   grid over query-time blocks ("parallel"); memory handed over in bf16.
# --------------------------------------------------------------------------
def _match_attn_linear_kernel(q_ref, m_ref, mask_ref, wt_ref, bt_ref,
                              wl_ref, bl_ref, out_ref):
    mask = mask_ref[...]                                        # [Bp, S] f32
    mm = m_ref[...] * mask[:, :, None].astype(m_ref.dtype)      # masked memory (bf16)
    q = q_ref[...]                                              # [Bp, tq, 2D] bf16
    Q = jnp.einsum('btm,mn->btn', q, wt_ref[...],
                   preferred_element_type=F32) + bt_ref[...]    # transform(x)
    scores = jnp.einsum('btm,bsm->bts', Q.astype(BF16), mm,
                        preferred_element_type=F32)
    scores = scores * mask[:, None, :]
    # tanh bounds scores to [-1, 1] -> softmax needs no max-subtraction
    a = jnp.exp(jnp.tanh(scores))
    a = a / jnp.sum(a, axis=-1, keepdims=True)
    a = a * mask[:, None, :]
    a = a / jnp.maximum(jnp.sum(a, axis=-1, keepdims=True), 1e-20)
    pool = jnp.einsum('bts,bsm->btm', a.astype(BF16), mm,
                      preferred_element_type=F32)
    hidden = jnp.einsum('btm,md->btd', pool.astype(BF16), wl_ref[...],
                        preferred_element_type=F32) + bl_ref[...]
    out_ref[...] = jnp.maximum(hidden, 0.0)                     # ReLU(linear(...))


def run_match_attn_linear(gru_out, umask_p, kp):
    T, Bp, M2 = gru_out.shape
    Dp = kp['linear_w'].shape[1]
    # TODO(synk): absorb this transpose pair into a batch-major GRU output layout.
    Mb = jnp.transpose(gru_out, (1, 0, 2))                      # [Bp, T, 2D] bf16
    tq = T if T <= 256 else 128
    grid = (pl.cdiv(T, tq),)
    hb = pl.pallas_call(
        _match_attn_linear_kernel,
        out_shape=jax.ShapeDtypeStruct((Bp, T, Dp), F32),
        grid=grid,
        in_specs=[
            pl.BlockSpec((Bp, tq, M2), lambda i: (0, i, 0)),    # query-time block
            pl.BlockSpec((Bp, T, M2), lambda i: (0, 0, 0)),     # full memory
            pl.BlockSpec((Bp, T), lambda i: (0, 0)),
            pl.BlockSpec((M2, M2), lambda i: (0, 0)),
            pl.BlockSpec((1, M2), lambda i: (0, 0)),
            pl.BlockSpec((M2, Dp), lambda i: (0, 0)),
            pl.BlockSpec((1, Dp), lambda i: (0, 0)),
        ],
        out_specs=pl.BlockSpec((Bp, tq, Dp), lambda i: (0, i, 0)),
        compiler_params=pltpu.CompilerParams(
            dimension_semantics=("parallel",),
            vmem_limit_bytes=_vmem_limit()),
    )(Mb, Mb, umask_p, kp['matchatt_w'], kp['matchatt_b'],
      kp['linear_w'], kp['linear_b'])
    return jnp.transpose(hb, (1, 0, 2))                         # [T, Bp, Dp]


# time_attn=False branch: plain Linear + ReLU
def _linear_relu_kernel(x_ref, w_ref, b_ref, out_ref):
    y = jnp.einsum('tbm,md->tbd', x_ref[...].astype(BF16), w_ref[...],
                   preferred_element_type=F32) + b_ref[...]
    out_ref[...] = jnp.maximum(y, 0.0)


def run_linear_relu(gru_out, kp):
    T, Bp, _ = gru_out.shape
    Dp = kp['linear_w'].shape[1]
    return pl.pallas_call(
        _linear_relu_kernel,
        out_shape=jax.ShapeDtypeStruct((T, Bp, Dp), F32),
        in_specs=[_VMEM] * 3,
        out_specs=_VMEM,
        compiler_params=pltpu.CompilerParams(vmem_limit_bytes=_vmem_limit()),
    )(gru_out, kp['linear_w'], kp['linear_b'])


# --------------------------------------------------------------------------
# Host glue: dense structures + static normalizations, padding, params
# --------------------------------------------------------------------------
def build_dense_structures(edge_index, edge_type, num_nodes, num_relations):
    src, dst = np.asarray(edge_index[0]), np.asarray(edge_index[1])
    E = src.shape[0]
    n_pad = _round_up(max(num_nodes, 1), 128)           # MXU contraction/lane dims
    num_he = int(dst.max()) + 1 if E > 0 else 1
    m_pad = _round_up(num_he, 128)
    A_rel = np.zeros((num_relations, n_pad, n_pad), np.float32)
    Adj = np.zeros((n_pad, n_pad), np.float32)
    Hinc = np.zeros((n_pad, m_pad), np.float32)
    for k in range(E):
        s, d, r = int(src[k]), int(dst[k]), int(edge_type[k])
        A_rel[r, d, s] += 1.0          # RGCN: message src->dst aggregated at dst
        Adj[d, s] += 1.0               # highConv: aggregate at target node
        Hinc[s, d] += 1.0              # hyperedge_index[0]=node, [1]=hyperedge id
    # RGCN scatter-mean -> row-normalize each relation adjacency (static)
    deg = A_rel.sum(axis=2, keepdims=True)
    A_rel_norm = A_rel / np.maximum(deg, 1.0)
    # HypergraphConv degree normalizations folded into the incidence matrices
    Dv = Hinc.sum(axis=1)
    Dinv = np.where(Dv > 0, 1.0 / np.maximum(Dv, 1.0), 0.0).astype(np.float32)
    Bv = Hinc.sum(axis=0)
    Binv = np.where(Bv > 0, 1.0 / np.maximum(Bv, 1.0), 0.0).astype(np.float32)
    Hinc_s = Hinc * Dinv[:, None]                   # D^-1 folded (edge -> node)
    HincT_s = Hinc.T * Binv[:, None]                # B^-1 folded (node -> edge)
    # highConv deg^-1/2 (PyG degree(row) = source degree), folded into Adj
    deg_src = Adj.sum(axis=0)
    dis = np.where(deg_src > 0, 1.0 / np.sqrt(np.maximum(deg_src, 1.0)), 0.0)
    Adj_norm = Adj * dis[:, None] * dis[None, :]
    return dict(
        a_rel=jnp.asarray(A_rel_norm, BF16),
        hinc_s=jnp.asarray(Hinc_s, BF16),
        hinct_s=jnp.asarray(np.ascontiguousarray(HincT_s), BF16),
        adj_norm=jnp.asarray(Adj_norm, BF16),
        n_pad=n_pad,
    )


def utterance_to_conversation_jax(outputs, seq_lengths):
    max_len = max(seq_lengths)
    convs, start = [], 0
    for l in seq_lengths:
        seg = outputs[start:start + l]
        if max_len > l:
            seg = jnp.concatenate(
                [seg, jnp.zeros((max_len - l, seg.shape[1]), seg.dtype)], axis=0)
        convs.append(seg)
        start += l
    return jnp.transpose(jnp.stack(convs, axis=0), (1, 0, 2))     # [T, B, D_h]


def init_params(key, num_features, hidden, num_relations):
    """Unpadded parameters with the same shapes as the PyTorch module."""
    D_h = num_features + hidden
    ks = jax.random.split(key, 64)
    idx = [0]

    def rnd(shape, scale=0.1):
        k = ks[idx[0]]
        idx[0] += 1
        return jax.random.normal(k, shape, F32) * scale

    p = {
        'rgcn_w': rnd((num_relations, num_features, hidden)),
        'rgcn_root': rnd((num_features, hidden)),
        'rgcn_b': rnd((1, hidden)),
        'hg_b': jnp.zeros((1, hidden), F32),    # HypergraphConv bias init = zeros
        'gate_wi': rnd((1, hidden)),
        'gate_wj': rnd((1, hidden)),
        'gate_b': rnd((1, 1)),
    }
    gru = []
    for layer in range(2):
        in_dim = D_h if layer == 0 else 2 * D_h
        for _direction in range(2):
            g = {}
            for name in ('ir', 'iz', 'in'):
                g['w' + name] = rnd((in_dim, D_h))
                g['b' + name] = rnd((1, D_h))
            for name in ('hr', 'hz', 'hn'):
                g['w' + name] = rnd((D_h, D_h))
                g['b' + name] = rnd((1, D_h))
            gru.append(g)
    p['gru'] = gru
    p['matchatt_w'] = rnd((2 * D_h, 2 * D_h))
    p['matchatt_b'] = rnd((1, 2 * D_h))
    p['linear_w'] = rnd((2 * D_h, D_h))
    p['linear_b'] = rnd((1, D_h))
    return p


def _embed2d(w, rows, cols, shape):
    out = np.zeros(shape, np.float32)
    out[np.ix_(rows, cols)] = np.asarray(w, np.float32)
    return out


def _embed1d(v, cols, n):
    out = np.zeros((1, n), np.float32)
    out[0, cols] = np.asarray(v, np.float32).reshape(-1)
    return out


def prepare_params(p, num_features, hidden, num_relations):
    """Zero-pad every weight to 128-lane-aligned layouts (real lanes identical,
    pad lanes stay exactly zero) and pre-fuse RGCN / GRU gate weight blocks."""
    F_r, H_r = num_features, hidden
    D_h = num_features + hidden
    F_pad = _round_up(F_r, 128)
    H_pad = _round_up(H_r, 128)
    Dh_pad = _round_up(D_h, 128)
    R = num_relations

    rH = np.arange(H_r)
    rD = np.arange(D_h)
    two_blk = np.concatenate([rD, Dh_pad + rD])                    # fwd|bwd lane layout
    gate_blk = np.concatenate([rD, Dh_pad + rD, 2 * Dh_pad + rD])  # r|z|n gate layout

    # ---- graph stack: W_all = [W_root | W_0 | ... | W_{R-1}] ----
    w_all = np.zeros((F_pad, (R + 1) * H_pad), np.float32)
    w_all[:F_r, :H_r] = np.asarray(p['rgcn_root'], np.float32)
    for r in range(R):
        w_all[:F_r, (r + 1) * H_pad:(r + 1) * H_pad + H_r] = \
            np.asarray(p['rgcn_w'][r], np.float32)

    kp = {
        'w_all': jnp.asarray(w_all, BF16),
        'rgcn_b': jnp.asarray(_embed1d(p['rgcn_b'], rH, H_pad), F32),
        'hg_b': jnp.asarray(_embed1d(p['hg_b'], rH, H_pad), F32),
        'gate_wi': jnp.asarray(_embed1d(p['gate_wi'], rH, H_pad), F32),
        'gate_wj': jnp.asarray(_embed1d(p['gate_wj'], rH, H_pad), F32),
        'gate_b': jnp.asarray(p['gate_b'], F32),
        'dims': dict(F_pad=F_pad, H_pad=H_pad, Dh_pad=Dh_pad, D_h=D_h,
                     num_features=F_r, hidden=H_r),
    }

    # ---- GRU: fuse (r,z,n) gates, fold biases, stack both directions ----
    gru_layers = []
    for l in range(2):
        in_pad = Dh_pad if l == 0 else 2 * Dh_pad
        in_rows = rD if l == 0 else two_blk
        wi_s, wh_s, bx_s, bhn_s = [], [], [], []
        for d in range(2):
            g = p['gru'][2 * l + d]
            wi = np.concatenate([np.asarray(g['wir']), np.asarray(g['wiz']),
                                 np.asarray(g['win'])], axis=1)
            wh = np.concatenate([np.asarray(g['whr']), np.asarray(g['whz']),
                                 np.asarray(g['whn'])], axis=1)
            bx = np.concatenate([np.asarray(g['bir']) + np.asarray(g['bhr']),
                                 np.asarray(g['biz']) + np.asarray(g['bhz']),
                                 np.asarray(g['bin'])], axis=1)
            wi_s.append(_embed2d(wi, in_rows, gate_blk, (in_pad, 3 * Dh_pad)))
            wh_s.append(_embed2d(wh, rD, gate_blk, (Dh_pad, 3 * Dh_pad)))
            bx_s.append(_embed1d(bx, gate_blk, 3 * Dh_pad))
            bhn_s.append(_embed1d(g['bhn'], rD, Dh_pad))
        gru_layers.append(dict(
            wi=jnp.asarray(np.stack(wi_s), BF16),
            wh=jnp.asarray(np.stack(wh_s), BF16),
            bx=jnp.asarray(np.stack(bx_s), F32),
            bhn=jnp.asarray(np.stack(bhn_s), F32),
        ))
    kp['gru'] = gru_layers

    # ---- attention + output linear ----
    kp['matchatt_w'] = jnp.asarray(_embed2d(p['matchatt_w'], two_blk, two_blk,
                                            (2 * Dh_pad, 2 * Dh_pad)), BF16)
    kp['matchatt_b'] = jnp.asarray(_embed1d(p['matchatt_b'], two_blk, 2 * Dh_pad), F32)
    kp['linear_w'] = jnp.asarray(_embed2d(p['linear_w'], two_blk, rD,
                                          (2 * Dh_pad, Dh_pad)), BF16)
    kp['linear_b'] = jnp.asarray(_embed1d(p['linear_b'], rD, Dh_pad), F32)
    return kp


def graph_network_forward(features, struct, seq_lengths, umask, kp, time_attn=True):
    dims = kp['dims']
    N, F_r = features.shape
    H_r, D_h = dims['hidden'], dims['D_h']
    n_pad = struct['n_pad']
    B = len(seq_lengths)
    Bp = _round_up(B, 8)

    # ---- graph stack ----
    x_pad = jnp.pad(features, ((0, n_pad - N), (0, dims['F_pad'] - F_r)))
    node_emb = run_rgcn_hyper(x_pad, struct, kp)          # [n_pad, H_pad] bf16
    g_out = run_highconv(node_emb, struct, kp)            # [n_pad, H_pad] bf16
    out = g_out[:N, :H_r]

    # ---- utterances -> padded conversations (bf16 handoff to the GRU) ----
    outputs = jnp.concatenate([features.astype(BF16), out], axis=-1)   # [N, D_h]
    outputs = utterance_to_conversation_jax(outputs, seq_lengths)      # [T, B, D_h]
    outputs = jnp.pad(outputs, ((0, 0), (0, Bp - B), (0, dims['Dh_pad'] - D_h)))

    # ---- 2-layer bidirectional GRU ----
    gru_out = run_bigru(outputs, kp['gru'])               # [T, Bp, 2*Dh_pad] bf16

    # ---- MatchingAttention over every timestep + Linear + ReLU ----
    if time_attn:
        umask_p = jnp.pad(umask.astype(F32), ((0, Bp - B), (0, 0)))
        hidden = run_match_attn_linear(gru_out, umask_p, kp)   # [T, Bp, Dh_pad]
    else:
        hidden = run_linear_relu(gru_out, kp)
    return (hidden[:, :B, :D_h],)


# --------------------------------------------------------------------------
if __name__ == "__main__":
    num_features, hidden_size, num_relations = 32, 32, 2
    seq_lengths = [5, 3]
    num_nodes = sum(seq_lengths)
    D_h = num_features + hidden_size

    # fully connected (both directions, no self loops) inside each conversation
    src_l, dst_l, typ_l = [], [], []
    start = 0
    for l in seq_lengths:
        for i in range(l):
            for j in range(l):
                if i != j:
                    src_l.append(start + i)
                    dst_l.append(start + j)
                    typ_l.append(0 if i < j else 1)
        start += l
    edge_index = np.array([src_l, dst_l], dtype=np.int64)          # [2, 26]
    edge_type = np.array(typ_l, dtype=np.int64)                    # [26]

    key = jax.random.PRNGKey(0)
    kf, kparam = jax.random.split(key)
    features = jax.random.normal(kf, (num_nodes, num_features), F32)
    umask = jnp.asarray(np.array([[1, 1, 1, 1, 1],
                                  [1, 1, 1, 0, 0]], np.float32))    # [B, T]
    params = init_params(kparam, num_features, hidden_size, num_relations)
    kparams = prepare_params(params, num_features, hidden_size, num_relations)
    struct = build_dense_structures(edge_index, edge_type, num_nodes, num_relations)

    (hidden,) = graph_network_forward(features, struct, seq_lengths, umask,
                                      kparams, time_attn=True)
    hidden = jax.block_until_ready(hidden)

    assert hidden.shape == (max(seq_lengths), len(seq_lengths), D_h)
    assert bool(jnp.all(jnp.isfinite(hidden)))
    print("KERNEL_OK")
</pallas_src>

<mosaic_0001>
module attributes {stable_mosaic.version = 11 : i64} {
  func.func @_rgcn_hyper_kernel(%arg0: memref<128x128xf32, #tpu.memory_space<vmem>>, %arg1: memref<2x128x128xbf16, #tpu.memory_space<vmem>>, %arg2: memref<128x128xbf16, #tpu.memory_space<vmem>>, %arg3: memref<128x128xbf16, #tpu.memory_space<vmem>>, %arg4: memref<128x384xbf16, #tpu.memory_space<vmem>>, %arg5: memref<1x128xf32, #tpu.memory_space<vmem>>, %arg6: memref<1x128xf32, #tpu.memory_space<vmem>>, %arg7: memref<128x128xbf16, #tpu.memory_space<vmem>>) attributes {dimension_semantics = [], scalar_prefetch = 0 : i64, scratch_operands = 0 : i64, tpu.core_type = #tpu.core_type<tc>} {
    %c0 = arith.constant 0 : index
    %c0_0 = arith.constant 0 : index
    %0 = vector.load %arg0[%c0, %c0_0] : memref<128x128xf32, #tpu.memory_space<vmem>>, vector<128x128xf32>
    %1 = arith.truncf %0 : vector<128x128xf32> to vector<128x128xbf16>
    %c0_1 = arith.constant 0 : index
    %c0_2 = arith.constant 0 : index
    %2 = vector.load %arg4[%c0_1, %c0_2] : memref<128x384xbf16, #tpu.memory_space<vmem>>, vector<128x384xbf16>
    %cst = arith.constant dense<0.000000e+00> : vector<128x384xf32>
    %3 = tpu.matmul %1, %2, %cst {dimension_numbers = #tpu.dot_dimension_numbers<[1], [0], [0], [1], [0, 0, 1, 1], [], []>} : vector<128x128xbf16>, vector<128x384xbf16>, vector<128x384xf32> -> vector<128x384xf32>
    %4 = vector.extract_strided_slice %3 {offsets = [0, 0], sizes = [128, 128], strides = [1, 1]} : vector<128x384xf32> to vector<128x128xf32>
    %c0_3 = arith.constant 0 : index
    %c0_4 = arith.constant 0 : index
    %5 = vector.load %arg5[%c0_3, %c0_4] : memref<1x128xf32, #tpu.memory_space<vmem>>, vector<1x128xf32>
    %6 = vector.broadcast %5 : vector<1x128xf32> to vector<128x128xf32>
    %7 = arith.addf %4, %6 : vector<128x128xf32>
    %c0_5 = arith.constant 0 : index
    %c0_6 = arith.constant 0 : index
    %c0_7 = arith.constant 0 : index
    %8 = vector.load %arg1[%c0_5, %c0_6, %c0_7] : memref<2x128x128xbf16, #tpu.memory_space<vmem>>, vector<1x128x128xbf16>
    %9 = vector.shape_cast %8 : vector<1x128x128xbf16> to vector<128x128xbf16>
    %10 = vector.extract_strided_slice %3 {offsets = [0, 128], sizes = [128, 128], strides = [1, 1]} : vector<128x384xf32> to vector<128x128xf32>
    %11 = arith.truncf %10 : vector<128x128xf32> to vector<128x128xbf16>
    %cst_8 = arith.constant dense<0.000000e+00> : vector<128x128xf32>
    %12 = tpu.matmul %9, %11, %cst_8 {dimension_numbers = #tpu.dot_dimension_numbers<[1], [0], [0], [1], [0, 0, 1, 1], [], []>} : vector<128x128xbf16>, vector<128x128xbf16>, vector<128x128xf32> -> vector<128x128xf32>
    %13 = arith.addf %7, %12 : vector<128x128xf32>
    %c1 = arith.constant 1 : index
    %c0_9 = arith.constant 0 : index
    %c0_10 = arith.constant 0 : index
    %14 = vector.load %arg1[%c1, %c0_9, %c0_10] : memref<2x128x128xbf16, #tpu.memory_space<vmem>>, vector<1x128x128xbf16>
    %15 = vector.shape_cast %14 : vector<1x128x128xbf16> to vector<128x128xbf16>
    %16 = vector.extract_strided_slice %3 {offsets = [0, 256], sizes = [128, 128], strides = [1, 1]} : vector<128x384xf32> to vector<128x128xf32>
    %17 = arith.truncf %16 : vector<128x128xf32> to vector<128x128xbf16>
    %cst_11 = arith.constant dense<0.000000e+00> : vector<128x128xf32>
    %18 = tpu.matmul %15, %17, %cst_11 {dimension_numbers = #tpu.dot_dimension_numbers<[1], [0], [0], [1], [0, 0, 1, 1], [], []>} : vector<128x128xbf16>, vector<128x128xbf16>, vector<128x128xf32> -> vector<128x128xf32>
    %19 = arith.addf %13, %18 : vector<128x128xf32>
    %c0_12 = arith.constant 0 : index
    %c0_13 = arith.constant 0 : index
    %20 = vector.load %arg3[%c0_12, %c0_13] : memref<128x128xbf16, #tpu.memory_space<vmem>>, vector<128x128xbf16>
    %21 = arith.truncf %19 : vector<128x128xf32> to vector<128x128xbf16>
    %cst_14 = arith.constant dense<0.000000e+00> : vector<128x128xf32>
    %22 = tpu.matmul %20, %21, %cst_14 {dimension_numbers = #tpu.dot_dimension_numbers<[1], [0], [0], [1], [0, 0, 1, 1], [], []>} : vector<128x128xbf16>, vector<128x128xbf16>, vector<128x128xf32> -> vector<128x128xf32>
    %c0_15 = arith.constant 0 : index
    %c0_16 = arith.constant 0 : index
    %23 = vector.load %arg2[%c0_15, %c0_16] : memref<128x128xbf16, #tpu.memory_space<vmem>>, vector<128x128xbf16>
    %24 = arith.truncf %22 : vector<128x128xf32> to vector<128x128xbf16>
    %cst_17 = arith.constant dense<0.000000e+00> : vector<128x128xf32>
    %25 = tpu.matmul %23, %24, %cst_17 {dimension_numbers = #tpu.dot_dimension_numbers<[1], [0], [0], [1], [0, 0, 1, 1], [], []>} : vector<128x128xbf16>, vector<128x128xbf16>, vector<128x128xf32> -> vector<128x128xf32>
    %c0_18 = arith.constant 0 : index
    %c0_19 = arith.constant 0 : index
    %26 = vector.load %arg6[%c0_18, %c0_19] : memref<1x128xf32, #tpu.memory_space<vmem>>, vector<1x128xf32>
    %27 = vector.broadcast %26 : vector<1x128xf32> to vector<128x128xf32>
    %28 = arith.addf %25, %27 : vector<128x128xf32>
    %cst_20 = arith.constant 0.000000e+00 : f32
    %29 = vector.broadcast %cst_20 : f32 to vector<128x128xf32>
    %30 = arith.cmpf oge, %28, %29 : vector<128x128xf32>
    %cst_21 = arith.constant 0.00999999977 : f32
    %31 = vector.broadcast %cst_21 : f32 to vector<128x128xf32>
    %32 = arith.mulf %31, %28 : vector<128x128xf32>
    %33 = arith.select %30, %28, %32 : vector<128x128xi1>, vector<128x128xf32>
    %34 = arith.truncf %33 : vector<128x128xf32> to vector<128x128xbf16>
    %c0_22 = arith.constant 0 : index
    %c0_23 = arith.constant 0 : index
    %35 = vector.load %arg7[%c0_22, %c0_23] : memref<128x128xbf16, #tpu.memory_space<vmem>>, vector<128x128xbf16>
    tpu.vector_store %arg7[%c0_22, %c0_23], %34 {strides = array<i32>} : memref<128x128xbf16, #tpu.memory_space<vmem>>, vector<128x128xbf16>,
    return
  }
}

</mosaic_0001>

<llo_original>
// kernel: tpu_custom_call.1
$region0: #{tpu_custom_call.1}
  #allocation0 [shape = 'u32[]', space=smem, size = 0x4, offset = 0x4, fixed_abs, tag = 'smem constant byte address 0x4 - core index']
  #allocation1 [shape = 'u32[144,128]{1,0:T(1,128)}', space=vmem, size = 0x12000, scoped, tag = 'internal scratch']
  %s0 = inlined_call_operand.hbm [shape: f32[128,128], index: 0, kind: input, shape index: {}]
  %s1 = inlined_call_operand.hbm [shape: bf16[2,128,128], index: 1, kind: input, shape index: {}]
  %s2 = inlined_call_operand.hbm [shape: bf16[128,128], index: 2, kind: input, shape index: {}]
  %s3 = inlined_call_operand.hbm [shape: bf16[128,128], index: 3, kind: input, shape index: {}]
  %s4 = inlined_call_operand.hbm [shape: bf16[128,384], index: 4, kind: input, shape index: {}]
  %s5 = inlined_call_operand.vmem [shape: f32[1,128], index: 5, kind: input, shape index: {}]
  %s6 = inlined_call_operand.vmem [shape: f32[1,128], index: 6, kind: input, shape index: {}]
  %s7 = inlined_call_operand.hbm [shape: bf16[128,128], index: 7, kind: output, shape index: {}]
  %s8 = sld [smem:[#allocation0]]
  $region58: #{tpu_custom_call.1} parent=0
    _
  %s10 = ssub.s32 1, %s8
  %s11 = scalar_select 0, %s10, %s8
  $region1: #{tpu_custom_call.1} parent=0
    #allocation2 [shape = 'u8[65536]{0}', space=vmem, size = 0x10000, scoped, tag = 'input window, operand 0, single buffered']
    #allocation3 [shape = 's32[1]{0}', space=sflag, size = 0x4, scoped, tag = 'scoped memory for tpu_custom_call.1']
    #allocation4 [shape = 's32[1]{0}', space=sflag, size = 0x4, scoped, tag = 'scoped memory for tpu_custom_call.1']
    #allocation5 [shape = 'u8[65536]{0}', space=vmem, size = 0x10000, scoped, tag = 'input window, operand 1, single buffered']
    #allocation6 [shape = 's32[1]{0}', space=sflag, size = 0x4, scoped, tag = 'scoped memory for tpu_custom_call.1']
    #allocation7 [shape = 'u8[32768]{0}', space=vmem, size = 0x8000, scoped, tag = 'input window, operand 2, single buffered']
    #allocation8 [shape = 'u8[32768]{0}', space=vmem, size = 0x8000, scoped, tag = 'input window, operand 3, single buffered']
    #allocation9 [shape = 's32[1]{0}', space=sflag, size = 0x4, scoped, tag = 'scoped memory for tpu_custom_call.1']
    #allocation10 [shape = 'u8[98304]{0}', space=vmem, size = 0x18000, scoped, tag = 'input window, operand 4, single buffered']
    #allocation11 [shape = 'u8[32768]{0}', space=vmem, size = 0x8000, scoped, tag = 'output window, operand 0, single buffered']
    %12 = vsyncpa [#allocation3], 0
    %13 = vsyncpa [#allocation6], 0
    %14 = vsyncpa [#allocation9], 0
    %15 = vsyncpa [#allocation4], 0
    // Predicated region
    $region2: #{tpu_custom_call.1} parent=1 // pred_check
      _
    $region3: #{tpu_custom_call.1} parent=1 // pred_check_branch
      %17 = sbr.rel (0) target = $region5
    $region4: #{tpu_custom_call.1} parent=1 // pred_region
      %s19 = ssub.s32 2048, 2048
      %20 = vsyncadd [#allocation3], %s19
      %s21 = sshll.u32 [#allocation2], 4
      %s22 = int_to_ptr.vmem [resolvable:$true] %s21
      %27 = dma.hbm_to_vmem [thread:$0]  %s0, 2048, %s22, [#allocation3], 128, 128, 8
    $region5: #{tpu_custom_call.1} parent=1 // pred_fallthru
      _
    // Predicated region
    $region6: #{tpu_custom_call.1} parent=1 // pred_check
      _
    $region7: #{tpu_custom_call.1} parent=1 // pred_check_branch
      %29 = sbr.rel (0) target = $region9
    $region8: #{tpu_custom_call.1} parent=1 // pred_region
      %s31 = ssub.s32 2048, 2048
      %32 = vsyncadd [#allocation6], %s31
      %s33 = sshll.u32 [#allocation5], 4
      %s34 = int_to_ptr.vmem [resolvable:$true] %s33
      %39 = dma.hbm_to_vmem [thread:$0]  %s1, 2048, %s34, [#allocation6], 64, 64, 4
    $region9: #{tpu_custom_call.1} parent=1 // pred_fallthru
      _
    // Predicated region
    $region10: #{tpu_custom_call.1} parent=1 // pred_check
      _
    $region11: #{tpu_custom_call.1} parent=1 // pred_check_branch
      %41 = sbr.rel (0) target = $region13
    $region12: #{tpu_custom_call.1} parent=1 // pred_region
      %s43 = ssub.s32 1024, 1024
      %44 = vsyncadd [#allocation6], %s43
      %s45 = sshll.u32 [#allocation7], 4
      %s46 = int_to_ptr.vmem [resolvable:$true] %s45
      %51 = dma.hbm_to_vmem [thread:$0]  %s2, 1024, %s46, [#allocation6], 64, 64, 4
    $region13: #{tpu_custom_call.1} parent=1 // pred_fallthru
      _
    // Predicated region
    $region14: #{tpu_custom_call.1} parent=1 // pred_check
      _
    $region15: #{tpu_custom_call.1} parent=1 // pred_check_branch
      %53 = sbr.rel (0) target = $region17
    $region16: #{tpu_custom_call.1} parent=1 // pred_region
      %s55 = ssub.s32 1024, 1024
      %56 = vsyncadd [#allocation9], %s55
      %s57 = sshll.u32 [#allocation8], 4
      %s58 = int_to_ptr.vmem [resolvable:$true] %s57
      %63 = dma.hbm_to_vmem [thread:$0]  %s3, 1024, %s58, [#allocation9], 64, 64, 4
    $region17: #{tpu_custom_call.1} parent=1 // pred_fallthru
      _
    // Predicated region
    $region18: #{tpu_custom_call.1} parent=1 // pred_check
      _
    $region19: #{tpu_custom_call.1} parent=1 // pred_check_branch
      %65 = sbr.rel (0) target = $region21
    $region20: #{tpu_custom_call.1} parent=1 // pred_region
      %s67 = ssub.s32 3072, 3072
      %68 = vsyncadd [#allocation9], %s67
      %s69 = sshll.u32 [#allocation10], 4
      %s70 = int_to_ptr.vmem [resolvable:$true] %s69
      %75 = dma.hbm_to_vmem [thread:$0]  %s4, 3072, %s70, [#allocation9], 192, 192, 12
    $region21: #{tpu_custom_call.1} parent=1 // pred_fallthru
      _
    // Predicated region
    $region22: #{tpu_custom_call.1} parent=1 // pred_check
      _
    $region23: #{tpu_custom_call.1} parent=1 // pred_check_branch
      %77 = sbr.rel (0) target = $region25
    $region24: #{tpu_custom_call.1} parent=1 // pred_region
      _
    $region25: #{tpu_custom_call.1} parent=1 // pred_fallthru
      _
    // Predicated region
    $region26: #{tpu_custom_call.1} parent=1 // pred_check
      _
    $region27: #{tpu_custom_call.1} parent=1 // pred_check_branch
      %79 = sbr.rel (0) target = $region29
    $region28: #{tpu_custom_call.1} parent=1 // pred_region
      _
    $region29: #{tpu_custom_call.1} parent=1 // pred_fallthru
      _
    // Predicated region
    $region30: #{tpu_custom_call.1} parent=1 // pred_check
      _
    $region31: #{tpu_custom_call.1} parent=1 // pred_check_branch
      %81 = sbr.rel (0) target = $region33
    $region32: #{tpu_custom_call.1} parent=1 // pred_region
      %82 = dma.done [#allocation3], 2048
    $region33: #{tpu_custom_call.1} parent=1 // pred_fallthru
      _
    // Predicated region
    $region34: #{tpu_custom_call.1} parent=1 // pred_check
      _
    $region35: #{tpu_custom_call.1} parent=1 // pred_check_branch
      %84 = sbr.rel (0) target = $region37
    $region36: #{tpu_custom_call.1} parent=1 // pred_region
      %85 = dma.done [#allocation6], 2048
    $region37: #{tpu_custom_call.1} parent=1 // pred_fallthru
      _
    // Predicated region
    $region38: #{tpu_custom_call.1} parent=1 // pred_check
      _
    $region39: #{tpu_custom_call.1} parent=1 // pred_check_branch
      %87 = sbr.rel (0) target = $region41
    $region40: #{tpu_custom_call.1} parent=1 // pred_region
      %88 = dma.done [#allocation6], 1024
    $region41: #{tpu_custom_call.1} parent=1 // pred_fallthru
      _
    // Predicated region
    $region42: #{tpu_custom_call.1} parent=1 // pred_check
      _
    $region43: #{tpu_custom_call.1} parent=1 // pred_check_branch
      %90 = sbr.rel (0) target = $region45
    $region44: #{tpu_custom_call.1} parent=1 // pred_region
      %91 = dma.done [#allocation9], 1024
    $region45: #{tpu_custom_call.1} parent=1 // pred_fallthru
      _
    // Predicated region
    $region46: #{tpu_custom_call.1} parent=1 // pred_check
      _
    $region47: #{tpu_custom_call.1} parent=1 // pred_check_branch
      %93 = sbr.rel (0) target = $region49
    $region48: #{tpu_custom_call.1} parent=1 // pred_region
      %94 = dma.done [#allocation9], 3072
    $region49: #{tpu_custom_call.1} parent=1 // pred_fallthru
      _
    %v96 = vld [vmem:[#allocation2] sm:$0xff]
    %v97 = vld [vmem:[#allocation2 + $0x8] sm:$0xff]
    %v98 = vld [vmem:[#allocation2 + $0x10] sm:$0xff]
    %v99 = vld [vmem:[#allocation2 + $0x18] sm:$0xff]
    %v100 = vld [vmem:[#allocation2 + $0x20] sm:$0xff]
    %v101 = vld [vmem:[#allocation2 + $0x28] sm:$0xff]
    %v102 = vld [vmem:[#allocation2 + $0x30] sm:$0xff]
    %v103 = vld [vmem:[#allocation2 + $0x38] sm:$0xff]
    %v104 = vld [vmem:[#allocation2 + $0x40] sm:$0xff]
    %v105 = vld [vmem:[#allocation2 + $0x48] sm:$0xff]
    %v106 = vld [vmem:[#allocation2 + $0x50] sm:$0xff]
    %v107 = vld [vmem:[#allocation2 + $0x58] sm:$0xff]
    %v108 = vld [vmem:[#allocation2 + $0x60] sm:$0xff]
    %v109 = vld [vmem:[#allocation2 + $0x68] sm:$0xff]
    %v110 = vld [vmem:[#allocation2 + $0x70] sm:$0xff]
    %v111 = vld [vmem:[#allocation2 + $0x78] sm:$0xff]
    %v112 = vpack.c.bf16 %v97, %v96
    %v113 = vpack.c.bf16 %v99, %v98
    %v114 = vpack.c.bf16 %v101, %v100
    %v115 = vpack.c.bf16 %v103, %v102
    %v116 = vpack.c.bf16 %v105, %v104
    %v117 = vpack.c.bf16 %v107, %v106
    %v118 = vpack.c.bf16 %v109, %v108
    %v119 = vpack.c.bf16 %v111, %v110
    %v120 = vld [vmem:[#allocation10] sm:$0xff]
    %v121 = vld [vmem:[#allocation10 + $0x8] sm:$0xf]
    %v122 = vld [vmem:[#allocation10 + $0xc] sm:$0xff]
    %v123 = vld [vmem:[#allocation10 + $0x14] sm:$0xf]
    %v124 = vld [vmem:[#allocation10 + $0x18] sm:$0xff]
    %v125 = vld [vmem:[#allocation10 + $0x20] sm:$0xf]
    %v126 = vld [vmem:[#allocation10 + $0x24] sm:$0xff]
    %v127 = vld [vmem:[#allocation10 + $0x2c] sm:$0xf]
    %v128 = vld [vmem:[#allocation10 + $0x30] sm:$0xff]
    %v129 = vld [vmem:[#allocation10 + $0x38] sm:$0xf]
    %v130 = vld [vmem:[#allocation10 + $0x3c] sm:$0xff]
    %v131 = vld [vmem:[#allocation10 + $0x44] sm:$0xf]
    %v132 = vld [vmem:[#allocation10 + $0x48] sm:$0xff]
    %v133 = vld [vmem:[#allocation10 + $0x50] sm:$0xf]
    %v134 = vld [vmem:[#allocation10 + $0x54] sm:$0xff]
    %v135 = vld [vmem:[#allocation10 + $0x5c] sm:$0xf]
    %v136 = vld [vmem:[#allocation10 + $0x60] sm:$0xff]
    %v137 = vld [vmem:[#allocation10 + $0x68] sm:$0xf]
    %v138 = vld [vmem:[#allocation10 + $0x6c] sm:$0xff]
    %v139 = vld [vmem:[#allocation10 + $0x74] sm:$0xf]
    %v140 = vld [vmem:[#allocation10 + $0x78] sm:$0xff]
    %v141 = vld [vmem:[#allocation10 + $0x80] sm:$0xf]
    %v142 = vld [vmem:[#allocation10 + $0x84] sm:$0xff]
    %v143 = vld [vmem:[#allocation10 + $0x8c] sm:$0xf]
    %v144 = vld [vmem:[#allocation10 + $0x90] sm:$0xff]
    %v145 = vld [vmem:[#allocation10 + $0x98] sm:$0xf]
    %v146 = vld [vmem:[#allocation10 + $0x9c] sm:$0xff]
    %v147 = vld [vmem:[#allocation10 + $0xa4] sm:$0xf]
    %v148 = vld [vmem:[#allocation10 + $0xa8] sm:$0xff]
    %v149 = vld [vmem:[#allocation10 + $0xb0] sm:$0xf]
    %v150 = vld [vmem:[#allocation10 + $0xb4] sm:$0xff]
    %v151 = vld [vmem:[#allocation10 + $0xbc] sm:$0xf]
    %v184 = vunpack.c.l.b16 %v120
    %v185 = vunpack.c.h.b16 %v120
    %v186 = vunpack.c.l.b16 %v121
    %v187 = vunpack.c.l.b16 %v122
    %v188 = vunpack.c.h.b16 %v122
    %v189 = vunpack.c.l.b16 %v123
    %v190 = vunpack.c.l.b16 %v124
    %v191 = vunpack.c.h.b16 %v124
    %v192 = vunpack.c.l.b16 %v125
    %v193 = vunpack.c.l.b16 %v126
    %v194 = vunpack.c.h.b16 %v126
    %v195 = vunpack.c.l.b16 %v127
    %v196 = vunpack.c.l.b16 %v128
    %v197 = vunpack.c.h.b16 %v128
    %v198 = vunpack.c.l.b16 %v129
    %v199 = vunpack.c.l.b16 %v130
    %v200 = vunpack.c.h.b16 %v130
    %v201 = vunpack.c.l.b16 %v131
    %v202 = vunpack.c.l.b16 %v132
    %v203 = vunpack.c.h.b16 %v132
    %v204 = vunpack.c.l.b16 %v133
    %v205 = vunpack.c.l.b16 %v134
    %v206 = vunpack.c.h.b16 %v134
    %v207 = vunpack.c.l.b16 %v135
    %v208 = vunpack.c.l.b16 %v136
    %v209 = vunpack.c.h.b16 %v136
    %v210 = vunpack.c.l.b16 %v137
    %v211 = vunpack.c.l.b16 %v138
    %v212 = vunpack.c.h.b16 %v138
    %v213 = vunpack.c.l.b16 %v139
    %v214 = vunpack.c.l.b16 %v140
    %v215 = vunpack.c.h.b16 %v140
    %v216 = vunpack.c.l.b16 %v141
    %v217 = vunpack.c.l.b16 %v142
    %v218 = vunpack.c.h.b16 %v142
    %v219 = vunpack.c.l.b16 %v143
    %v220 = vunpack.c.l.b16 %v144
    %v221 = vunpack.c.h.b16 %v144
    %v222 = vunpack.c.l.b16 %v145
    %v223 = vunpack.c.l.b16 %v146
    %v224 = vunpack.c.h.b16 %v146
    %v225 = vunpack.c.l.b16 %v147
    %v226 = vunpack.c.l.b16 %v148
    %v227 = vunpack.c.h.b16 %v148
    %v228 = vunpack.c.l.b16 %v149
    %v229 = vunpack.c.l.b16 %v150
    %v230 = vunpack.c.h.b16 %v150
    %v231 = vunpack.c.l.b16 %v151
    %v232 = vpack.c.b16 %v187, %v184
    %v233 = vpack.c.b16 %v188, %v185
    %v234 = vpack.c.b16 %v189, %v186
    %v235 = vpack.c.b16 %v193, %v190
    %v236 = vpack.c.b16 %v194, %v191
    %v237 = vpack.c.b16 %v195, %v192
    %v238 = vpack.c.b16 %v199, %v196
    %v239 = vpack.c.b16 %v200, %v197
    %v240 = vpack.c.b16 %v201, %v198
    %v241 = vpack.c.b16 %v205, %v202
    %v242 = vpack.c.b16 %v206, %v203
    %v243 = vpack.c.b16 %v207, %v204
    %v244 = vpack.c.b16 %v211, %v208
    %v245 = vpack.c.b16 %v212, %v209
    %v246 = vpack.c.b16 %v213, %v210
    %v247 = vpack.c.b16 %v217, %v214
    %v248 = vpack.c.b16 %v218, %v215
    %v249 = vpack.c.b16 %v219, %v216
    %v250 = vpack.c.b16 %v223, %v220
    %v251 = vpack.c.b16 %v224, %v221
    %v252 = vpack.c.b16 %v225, %v222
    %v253 = vpack.c.b16 %v229, %v226
    %v254 = vpack.c.b16 %v230, %v227
    %v255 = vpack.c.b16 %v231, %v228
    %280 = vmatprep.subr.bf16.mxu0 %v233
    %281 = vmatpush1.bf16.msra.mxu0 %v232
    %282 = vmatprep.subr.bf16.mxu0 %v236
    %283 = vmatpush1.bf16.msra.mxu0 %v235
    %284 = vmatprep.subr.bf16.mxu0 %v239
    %285 = vmatpush1.bf16.msra.mxu0 %v238
    %286 = vmatprep.subr.bf16.mxu0 %v242
    %287 = vmatpush1.bf16.msra.mxu0 %v241
    %288 = vmatprep.subr.bf16.mxu0 %v245
    %289 = vmatpush1.bf16.msra.mxu0 %v244
    %290 = vmatprep.subr.bf16.mxu0 %v248
    %291 = vmatpush1.bf16.msra.mxu0 %v247
    %292 = vmatprep.subr.bf16.mxu0 %v251
    %293 = vmatpush1.bf16.msra.mxu0 %v250
    %294 = vmatprep.subr.bf16.mxu0 %v254
    %295 = vmatpush1.bf16.msra.mxu0 %v253
    %296 = vmatprep.subr.bf16.mxu0 0
    %297 = vmatpush1.bf16.msra.mxu0 0
    %298 = vmatprep.subr.bf16.mxu0 0
    %299 = vmatpush1.bf16.msra.mxu0 0
    %300 = vmatprep.subr.bf16.mxu0 0
    %301 = vmatpush1.bf16.msra.mxu0 0
    %302 = vmatprep.subr.bf16.mxu0 0
    %303 = vmatpush1.bf16.msra.mxu0 0
    %304 = vmatprep.subr.bf16.mxu0 0
    %305 = vmatpush1.bf16.msra.mxu0 0
    %306 = vmatprep.subr.bf16.mxu0 0
    %307 = vmatpush1.bf16.msra.mxu0 0
    %308 = vmatprep.subr.bf16.mxu0 0
    %309 = vmatpush1.bf16.msra.mxu0 0
    %310 = vmatprep.subr.bf16.mxu0 0
    %311 = vmatpush1.bf16.msra.mxu0 0
    %312 = vmatprep.mubr.bf16.mxu0 0
    %313 = vmatmul.mubr.bf16.gmra.mrb[0].mxu0 %v112
    %v314 = vpop.f32.mrb[0].mxu0
    %v315 = vadd.f32 0.0, %v314
    %v316 = vpop.f32.mrb[0].mxu0
    %v317 = vadd.f32 0.0, %v316
    %v318 = vpop.f32.mrb[0].mxu0
    %v319 = vadd.f32 0.0, %v318
    %v320 = vpop.f32.mrb[0].mxu0
    %v321 = vadd.f32 0.0, %v320
    %322 = vmatprep.mubr.bf16.mxu0 0
    %323 = vmatmul.mubr.bf16.gmra.mrb[0].mxu0 %v113
    %v324 = vpop.f32.mrb[0].mxu0
    %v325 = vadd.f32 0.0, %v324
    %v326 = vpop.f32.mrb[0].mxu0
    %v327 = vadd.f32 0.0, %v326
    %v328 = vpop.f32.mrb[0].mxu0
    %v329 = vadd.f32 0.0, %v328
    %v330 = vpop.f32.mrb[0].mxu0
    %v331 = vadd.f32 0.0, %v330
    %332 = vmatprep.mubr.bf16.mxu0 0
    %333 = vmatmul.mubr.bf16.gmra.mrb[0].mxu0 %v114
    %v334 = vpop.f32.mrb[0].mxu0
    %v335 = vadd.f32 0.0, %v334
    %v336 = vpop.f32.mrb[0].mxu0
    %v337 = vadd.f32 0.0, %v336
    %v338 = vpop.f32.mrb[0].mxu0
    %v339 = vadd.f32 0.0, %v338
    %v340 = vpop.f32.mrb[0].mxu0
    %v341 = vadd.f32 0.0, %v340
    %342 = vmatprep.mubr.bf16.mxu0 0
    %343 = vmatmul.mubr.bf16.gmra.mrb[0].mxu0 %v115
    %v344 = vpop.f32.mrb[0].mxu0
    %v345 = vadd.f32 0.0, %v344
    %v346 = vpop.f32.mrb[0].mxu0
    %v347 = vadd.f32 0.0, %v346
    %v348 = vpop.f32.mrb[0].mxu0
    %v349 = vadd.f32 0.0, %v348
    %v350 = vpop.f32.mrb[0].mxu0
    %v351 = vadd.f32 0.0, %v350
    %352 = vmatprep.mubr.bf16.mxu0 0
    %353 = vmatmul.mubr.bf16.gmra.mrb[0].mxu0 %v116
    %v354 = vpop.f32.mrb[0].mxu0
    %v355 = vadd.f32 0.0, %v354
    %v356 = vpop.f32.mrb[0].mxu0
    %v357 = vadd.f32 0.0, %v356
    %v358 = vpop.f32.mrb[0].mxu0
    %v359 = vadd.f32 0.0, %v358
    %v360 = vpop.f32.mrb[0].mxu0
    %v361 = vadd.f32 0.0, %v360
    %362 = vmatprep.mubr.bf16.mxu0 0
    %363 = vmatmul.mubr.bf16.gmra.mrb[0].mxu0 %v117
    %v364 = vpop.f32.mrb[0].mxu0
    %v365 = vadd.f32 0.0, %v364
    %v366 = vpop.f32.mrb[0].mxu0
    %v367 = vadd.f32 0.0, %v366
    %v368 = vpop.f32.mrb[0].mxu0
    %v369 = vadd.f32 0.0, %v368
    %v370 = vpop.f32.mrb[0].mxu0
    %v371 = vadd.f32 0.0, %v370
    %372 = vmatprep.mubr.bf16.mxu0 0
    %373 = vmatmul.mubr.bf16.gmra.mrb[0].mxu0 %v118
    %v374 = vpop.f32.mrb[0].mxu0
    %v375 = vadd.f32 0.0, %v374
    %v376 = vpop.f32.mrb[0].mxu0
    %v377 = vadd.f32 0.0, %v376
    %v378 = vpop.f32.mrb[0].mxu0
    %v379 = vadd.f32 0.0, %v378
    %v380 = vpop.f32.mrb[0].mxu0
    %v381 = vadd.f32 0.0, %v380
    %382 = vmatprep.mubr.bf16.mxu0 0
    %383 = vmatmul.mubr.bf16.gmra.mrb[0].mxu0 %v119
    %v384 = vpop.f32.mrb[0].mxu0
    %v385 = vadd.f32 0.0, %v384
    %v386 = vpop.f32.mrb[0].mxu0
    %v387 = vadd.f32 0.0, %v386
    %v388 = vpop.f32.mrb[0].mxu0
    %v389 = vadd.f32 0.0, %v388
    %v390 = vpop.f32.mrb[0].mxu0
    %v391 = vadd.f32 0.0, %v390
    %392 = vdwg.mxu0
    %393 = vmatprep.subr.bf16.mxu0 0
    %394 = vmatpush1.bf16.msra.mxu0 %v234
    %395 = vmatprep.subr.bf16.mxu0 0
    %396 = vmatpush1.bf16.msra.mxu0 %v237
    %397 = vmatprep.subr.bf16.mxu0 0
    %398 = vmatpush1.bf16.msra.mxu0 %v240
    %399 = vmatprep.subr.bf16.mxu0 0
    %400 = vmatpush1.bf16.msra.mxu0 %v243
    %401 = vmatprep.subr.bf16.mxu0 0
    %402 = vmatpush1.bf16.msra.mxu0 %v246
    %403 = vmatprep.subr.bf16.mxu0 0
    %404 = vmatpush1.bf16.msra.mxu0 %v249
    %405 = vmatprep.subr.bf16.mxu0 0
    %406 = vmatpush1.bf16.msra.mxu0 %v252
    %407 = vmatprep.subr.bf16.mxu0 0
    %408 = vmatpush1.bf16.msra.mxu0 %v255
    %409 = vmatprep.subr.bf16.mxu0 0
    %410 = vmatpush1.bf16.msra.mxu0 0
    %411 = vmatprep.subr.bf16.mxu0 0
    %412 = vmatpush1.bf16.msra.mxu0 0
    %413 = vmatprep.subr.bf16.mxu0 0
    %414 = vmatpush1.bf16.msra.mxu0 0
    %415 = vmatprep.subr.bf16.mxu0 0
    %416 = vmatpush1.bf16.msra.mxu0 0
    %417 = vmatprep.subr.bf16.mxu0 0
    %418 = vmatpush1.bf16.msra.mxu0 0
    %419 = vmatprep.subr.bf16.mxu0 0
    %420 = vmatpush1.bf16.msra.mxu0 0
    %421 = vmatprep.subr.bf16.mxu0 0
    %422 = vmatpush1.bf16.msra.mxu0 0
    %423 = vmatprep.subr.bf16.mxu0 0
    %424 = vmatpush1.bf16.msra.mxu0 0
    %425 = vmatprep.mubr.bf16.mxu0 0
    %426 = vmatmul.mubr.bf16.gmra.mrb[0].mxu0 %v112
    %v427 = vpop.f32.mrb[0].mxu0
    %v428 = vadd.f32 0.0, %v427
    %v429 = vpop.f32.mrb[0].mxu0
    %v430 = vpop.f32.mrb[0].mxu0
    %v431 = vadd.f32 0.0, %v430
    %v432 = vpop.f32.mrb[0].mxu0
    %433 = vmatprep.mubr.bf16.mxu0 0
    %434 = vmatmul.mubr.bf16.gmra.mrb[0].mxu0 %v113
    %v435 = vpop.f32.mrb[0].mxu0
    %v436 = vadd.f32 0.0, %v435
    %v437 = vpop.f32.mrb[0].mxu0
    %v438 = vpop.f32.mrb[0].mxu0
    %v439 = vadd.f32 0.0, %v438
    %v440 = vpop.f32.mrb[0].mxu0
    %441 = vmatprep.mubr.bf16.mxu0 0
    %442 = vmatmul.mubr.bf16.gmra.mrb[0].mxu0 %v114
    %v443 = vpop.f32.mrb[0].mxu0
    %v444 = vadd.f32 0.0, %v443
    %v445 = vpop.f32.mrb[0].mxu0
    %v446 = vpop.f32.mrb[0].mxu0
    %v447 = vadd.f32 0.0, %v446
    %v448 = vpop.f32.mrb[0].mxu0
    %449 = vmatprep.mubr.bf16.mxu0 0
    %450 = vmatmul.mubr.bf16.gmra.mrb[0].mxu0 %v115
    %v451 = vpop.f32.mrb[0].mxu0
    %v452 = vadd.f32 0.0, %v451
    %v453 = vpop.f32.mrb[0].mxu0
    %v454 = vpop.f32.mrb[0].mxu0
    %v455 = vadd.f32 0.0, %v454
    %v456 = vpop.f32.mrb[0].mxu0
    %457 = vmatprep.mubr.bf16.mxu0 0
    %458 = vmatmul.mubr.bf16.gmra.mrb[0].mxu0 %v116
    %v459 = vpop.f32.mrb[0].mxu0
    %v460 = vadd.f32 0.0, %v459
    %v461 = vpop.f32.mrb[0].mxu0
    %v462 = vpop.f32.mrb[0].mxu0
    %v463 = vadd.f32 0.0, %v462
    %v464 = vpop.f32.mrb[0].mxu0
    %465 = vmatprep.mubr.bf16.mxu0 0
    %466 = vmatmul.mubr.bf16.gmra.mrb[0].mxu0 %v117
    %v467 = vpop.f32.mrb[0].mxu0
    %v468 = vadd.f32 0.0, %v467
    %v469 = vpop.f32.mrb[0].mxu0
    %v470 = vpop.f32.mrb[0].mxu0
    %v471 = vadd.f32 0.0, %v470
    %v472 = vpop.f32.mrb[0].mxu0
    %473 = vmatprep.mubr.bf16.mxu0 0
    %474 = vmatmul.mubr.bf16.gmra.mrb[0].mxu0 %v118
    %v475 = vpop.f32.mrb[0].mxu0
    %v476 = vadd.f32 0.0, %v475
    %v477 = vpop.f32.mrb[0].mxu0
    %v478 = vpop.f32.mrb[0].mxu0
    %v479 = vadd.f32 0.0, %v478
    %v480 = vpop.f32.mrb[0].mxu0
    %481 = vmatprep.mubr.bf16.mxu0 0
    %482 = vmatmul.mubr.bf16.gmra.mrb[0].mxu0 %v119
    %v483 = vpop.f32.mrb[0].mxu0
    %v484 = vadd.f32 0.0, %v483
    %v485 = vpop.f32.mrb[0].mxu0
    %v486 = vpop.f32.mrb[0].mxu0
    %v487 = vadd.f32 0.0, %v486
    %v488 = vpop.f32.mrb[0].mxu0
    %489 = vdwg.mxu0
    %v490 = vld [vmem:[%s5] sm:$0x1]
    %v492 = vlaneseq
    %v493 = vshrl.u32 %v492, 7
    %v494 = vsub.s32 0, %v493
    %v495 = vrot.slane %v490, %v494
    %v497 = vadd.f32 %v315, %v495
    %v498 = vadd.f32 %v319, %v495
    %v499 = vadd.f32 %v325, %v495
    %v500 = vadd.f32 %v329, %v495
    %v501 = vadd.f32 %v335, %v495
    %v502 = vadd.f32 %v339, %v495
    %v503 = vadd.f32 %v345, %v495
    %v504 = vadd.f32 %v349, %v495
    %v505 = vadd.f32 %v355, %v495
    %v506 = vadd.f32 %v359, %v495
    %v507 = vadd.f32 %v365, %v495
    %v508 = vadd.f32 %v369, %v495
    %v509 = vadd.f32 %v375, %v495
    %v510 = vadd.f32 %v379, %v495
    %v511 = vadd.f32 %v385, %v495
    %v512 = vadd.f32 %v389, %v495
    %v513 = vld [vmem:[#allocation5] sm:$0xf]
    %v514 = vld [vmem:[#allocation5 + $0x4] sm:$0xf]
    %v515 = vld [vmem:[#allocation5 + $0x8] sm:$0xf]
    %v516 = vld [vmem:[#allocation5 + $0xc] sm:$0xf]
    %v517 = vld [vmem:[#allocation5 + $0x10] sm:$0xf]
    %v518 = vld [vmem:[#allocation5 + $0x14] sm:$0xf]
    %v519 = vld [vmem:[#allocation5 + $0x18] sm:$0xf]
    %v520 = vld [vmem:[#allocation5 + $0x1c] sm:$0xf]
    %v521 = vld [vmem:[#allocation5 + $0x20] sm:$0xf]
    %v522 = vld [vmem:[#allocation5 + $0x24] sm:$0xf]
    %v523 = vld [vmem:[#allocation5 + $0x28] sm:$0xf]
    %v524 = vld [vmem:[#allocation5 + $0x2c] sm:$0xf]
    %v525 = vld [vmem:[#allocation5 + $0x30] sm:$0xf]
    %v526 = vld [vmem:[#allocation5 + $0x34] sm:$0xf]
    %v527 = vld [vmem:[#allocation5 + $0x38] sm:$0xf]
    %v528 = vld [vmem:[#allocation5 + $0x3c] sm:$0xf]
    %v529 = vpack.c.bf16 %v321, %v317
    %v530 = vpack.c.bf16 %v331, %v327
    %v531 = vpack.c.bf16 %v341, %v337
    %v532 = vpack.c.bf16 %v351, %v347
    %v533 = vpack.c.bf16 %v361, %v357
    %v534 = vpack.c.bf16 %v371, %v367
    %v535 = vpack.c.bf16 %v381, %v377
    %v536 = vpack.c.bf16 %v391, %v387
    %v553 = vunpack.c.l.b16 %v513
    %v554 = vunpack.c.l.b16 %v514
    %v555 = vunpack.c.l.b16 %v515
    %v556 = vunpack.c.l.b16 %v516
    %v557 = vunpack.c.l.b16 %v517
    %v558 = vunpack.c.l.b16 %v518
    %v559 = vunpack.c.l.b16 %v519
    %v560 = vunpack.c.l.b16 %v520
    %v561 = vunpack.c.l.b16 %v521
    %v562 = vunpack.c.l.b16 %v522
    %v563 = vunpack.c.l.b16 %v523
    %v564 = vunpack.c.l.b16 %v524
    %v565 = vunpack.c.l.b16 %v525
    %v566 = vunpack.c.l.b16 %v526
    %v567 = vunpack.c.l.b16 %v527
    %v568 = vunpack.c.l.b16 %v528
    %v569 = vpack.c.b16 %v554, %v553
    %v570 = vpack.c.b16 %v556, %v555
    %v571 = vpack.c.b16 %v558, %v557
    %v572 = vpack.c.b16 %v560, %v559
    %v573 = vpack.c.b16 %v562, %v561
    %v574 = vpack.c.b16 %v564, %v563
    %v575 = vpack.c.b16 %v566, %v565
    %v576 = vpack.c.b16 %v568, %v567
    %585 = vmatprep.subr.bf16.mxu0 0
    %586 = vmatpush1.bf16.msra.mxu0 %v529
    %587 = vmatprep.subr.bf16.mxu0 0
    %588 = vmatpush1.bf16.msra.mxu0 %v530
    %589 = vmatprep.subr.bf16.mxu0 0
    %590 = vmatpush1.bf16.msra.mxu0 %v531
    %591 = vmatprep.subr.bf16.mxu0 0
    %592 = vmatpush1.bf16.msra.mxu0 %v532
    %593 = vmatprep.subr.bf16.mxu0 0
    %594 = vmatpush1.bf16.msra.mxu0 %v533
    %595 = vmatprep.subr.bf16.mxu0 0
    %596 = vmatpush1.bf16.msra.mxu0 %v534
    %597 = vmatprep.subr.bf16.mxu0 0
    %598 = vmatpush1.bf16.msra.mxu0 %v535
    %599 = vmatprep.subr.bf16.mxu0 0
    %600 = vmatpush1.bf16.msra.mxu0 %v536
    %601 = vmatprep.subr.bf16.mxu0 0
    %602 = vmatpush1.bf16.msra.mxu0 0
    %603 = vmatprep.subr.bf16.mxu0 0
    %604 = vmatpush1.bf16.msra.mxu0 0
    %605 = vmatprep.subr.bf16.mxu0 0
    %606 = vmatpush1.bf16.msra.mxu0 0
    %607 = vmatprep.subr.bf16.mxu0 0
    %608 = vmatpush1.bf16.msra.mxu0 0
    %609 = vmatprep.subr.bf16.mxu0 0
    %610 = vmatpush1.bf16.msra.mxu0 0
    %611 = vmatprep.subr.bf16.mxu0 0
    %612 = vmatpush1.bf16.msra.mxu0 0
    %613 = vmatprep.subr.bf16.mxu0 0
    %614 = vmatpush1.bf16.msra.mxu0 0
    %615 = vmatprep.subr.bf16.mxu0 0
    %616 = vmatpush1.bf16.msra.mxu0 0
    %617 = vmatprep.mubr.bf16.mxu0 0
    %618 = vmatmul.mubr.bf16.gmra.mrb[0].mxu0 %v569
    %v619 = vpop.f32.mrb[0].mxu0
    %v620 = vadd.f32 0.0, %v619
    %v621 = vpop.f32.mrb[0].mxu0
    %v622 = vpop.f32.mrb[0].mxu0
    %v623 = vadd.f32 0.0, %v622
    %v624 = vpop.f32.mrb[0].mxu0
    %625 = vmatprep.mubr.bf16.mxu0 0
    %626 = vmatmul.mubr.bf16.gmra.mrb[0].mxu0 %v570
    %v627 = vpop.f32.mrb[0].mxu0
    %v628 = vadd.f32 0.0, %v627
    %v629 = vpop.f32.mrb[0].mxu0
    %v630 = vpop.f32.mrb[0].mxu0
    %v631 = vadd.f32 0.0, %v630
    %v632 = vpop.f32.mrb[0].mxu0
    %633 = vmatprep.mubr.bf16.mxu0 0
    %634 = vmatmul.mubr.bf16.gmra.mrb[0].mxu0 %v571
    %v635 = vpop.f32.mrb[0].mxu0
    %v636 = vadd.f32 0.0, %v635
    %v637 = vpop.f32.mrb[0].mxu0
    %v638 = vpop.f32.mrb[0].mxu0
    %v639 = vadd.f32 0.0, %v638
    %v640 = vpop.f32.mrb[0].mxu0
    %641 = vmatprep.mubr.bf16.mxu0 0
    %642 = vmatmul.mubr.bf16.gmra.mrb[0].mxu0 %v572
    %v643 = vpop.f32.mrb[0].mxu0
    %v644 = vadd.f32 0.0, %v643
    %v645 = vpop.f32.mrb[0].mxu0
    %v646 = vpop.f32.mrb[0].mxu0
    %v647 = vadd.f32 0.0, %v646
    %v648 = vpop.f32.mrb[0].mxu0
    %649 = vmatprep.mubr.bf16.mxu0 0
    %650 = vmatmul.mubr.bf16.gmra.mrb[0].mxu0 %v573
    %v651 = vpop.f32.mrb[0].mxu0
    %v652 = vadd.f32 0.0, %v651
    %v653 = vpop.f32.mrb[0].mxu0
    %v654 = vpop.f32.mrb[0].mxu0
    %v655 = vadd.f32 0.0, %v654
    %v656 = vpop.f32.mrb[0].mxu0
    %657 = vmatprep.mubr.bf16.mxu0 0
    %658 = vmatmul.mubr.bf16.gmra.mrb[0].mxu0 %v574
    %v659 = vpop.f32.mrb[0].mxu0
    %v660 = vadd.f32 0.0, %v659
    %v661 = vpop.f32.mrb[0].mxu0
    %v662 = vpop.f32.mrb[0].mxu0
    %v663 = vadd.f32 0.0, %v662
    %v664 = vpop.f32.mrb[0].mxu0
    %665 = vmatprep.mubr.bf16.mxu0 0
    %666 = vmatmul.mubr.bf16.gmra.mrb[0].mxu0 %v575
    %v667 = vpop.f32.mrb[0].mxu0
    %v668 = vadd.f32 0.0, %v667
    %v669 = vpop.f32.mrb[0].mxu0
    %v670 = vpop.f32.mrb[0].mxu0
    %v671 = vadd.f32 0.0, %v670
    %v672 = vpop.f32.mrb[0].mxu0
    %673 = vmatprep.mubr.bf16.mxu0 0
    %674 = vmatmul.mubr.bf16.gmra.mrb[0].mxu0 %v576
    %v675 = vpop.f32.mrb[0].mxu0
    %v676 = vadd.f32 0.0, %v675
    %v677 = vpop.f32.mrb[0].mxu0
    %v678 = vpop.f32.mrb[0].mxu0
    %v679 = vadd.f32 0.0, %v678
    %v680 = vpop.f32.mrb[0].mxu0
    %681 = vdwg.mxu0
    %v682 = vadd.f32 %v497, %v620
    %v683 = vadd.f32 %v498, %v623
    %v684 = vadd.f32 %v499, %v628
    %v685 = vadd.f32 %v500, %v631
    %v686 = vadd.f32 %v501, %v636
    %v687 = vadd.f32 %v502, %v639
    %v688 = vadd.f32 %v503, %v644
    %v689 = vadd.f32 %v504, %v647
    %v690 = vadd.f32 %v505, %v652
    %v691 = vadd.f32 %v506, %v655
    %v692 = vadd.f32 %v507, %v660
    %v693 = vadd.f32 %v508, %v663
    %v694 = vadd.f32 %v509, %v668
    %v695 = vadd.f32 %v510, %v671
    %v696 = vadd.f32 %v511, %v676
    %v697 = vadd.f32 %v512, %v679
    %s698 = scalar_lea.vmem [#allocation5], 64
    %v699 = vld [vmem:[%s698] sm:$0xf]
    %v700 = vld [vmem:[%s698 + $0x4] sm:$0xf]
    %v701 = vld [vmem:[%s698 + $0x8] sm:$0xf]
    %v702 = vld [vmem:[%s698 + $0xc] sm:$0xf]
    %v703 = vld [vmem:[%s698 + $0x10] sm:$0xf]
    %v704 = vld [vmem:[%s698 + $0x14] sm:$0xf]
    %v705 = vld [vmem:[%s698 + $0x18] sm:$0xf]
    %v706 = vld [vmem:[%s698 + $0x1c] sm:$0xf]
    %v707 = vld [vmem:[%s698 + $0x20] sm:$0xf]
    %v708 = vld [vmem:[%s698 + $0x24] sm:$0xf]
    %v709 = vld [vmem:[%s698 + $0x28] sm:$0xf]
    %v710 = vld [vmem:[%s698 + $0x2c] sm:$0xf]
    %v711 = vld [vmem:[%s698 + $0x30] sm:$0xf]
    %v712 = vld [vmem:[%s698 + $0x34] sm:$0xf]
    %v713 = vld [vmem:[%s698 + $0x38] sm:$0xf]
    %v714 = vld [vmem:[%s698 + $0x3c] sm:$0xf]
    %v715 = vpack.c.bf16 %v431, %v428
    %v716 = vpack.c.bf16 %v439, %v436
    %v717 = vpack.c.bf16 %v447, %v444
    %v718 = vpack.c.bf16 %v455, %v452
    %v719 = vpack.c.bf16 %v463, %v460
    %v720 = vpack.c.bf16 %v471, %v468
    %v721 = vpack.c.bf16 %v479, %v476
    %v722 = vpack.c.bf16 %v487, %v484
    %v739 = vunpack.c.l.b16 %v699
    %v740 = vunpack.c.l.b16 %v700
    %v741 = vunpack.c.l.b16 %v701
    %v742 = vunpack.c.l.b16 %v702
    %v743 = vunpack.c.l.b16 %v703
    %v744 = vunpack.c.l.b16 %v704
    %v745 = vunpack.c.l.b16 %v705
    %v746 = vunpack.c.l.b16 %v706
    %v747 = vunpack.c.l.b16 %v707
    %v748 = vunpack.c.l.b16 %v708
    %v749 = vunpack.c.l.b16 %v709
    %v750 = vunpack.c.l.b16 %v710
    %v751 = vunpack.c.l.b16 %v711
    %v752 = vunpack.c.l.b16 %v712
    %v753 = vunpack.c.l.b16 %v713
    %v754 = vunpack.c.l.b16 %v714
    %v755 = vpack.c.b16 %v740, %v739
    %v756 = vpack.c.b16 %v742, %v741
    %v757 = vpack.c.b16 %v744, %v743
    %v758 = vpack.c.b16 %v746, %v745
    %v759 = vpack.c.b16 %v748, %v747
    %v760 = vpack.c.b16 %v750, %v749
    %v761 = vpack.c.b16 %v752, %v751
    %v762 = vpack.c.b16 %v754, %v753
    %771 = vmatprep.subr.bf16.mxu0 0
    %772 = vmatpush1.bf16.msra.mxu0 %v715
    %773 = vmatprep.subr.bf16.mxu0 0
    %774 = vmatpush1.bf16.msra.mxu0 %v716
    %775 = vmatprep.subr.bf16.mxu0 0
    %776 = vmatpush1.bf16.msra.mxu0 %v717
    %777 = vmatprep.subr.bf16.mxu0 0
    %778 = vmatpush1.bf16.msra.mxu0 %v718
    %779 = vmatprep.subr.bf16.mxu0 0
    %780 = vmatpush1.bf16.msra.mxu0 %v719
    %781 = vmatprep.subr.bf16.mxu0 0
    %782 = vmatpush1.bf16.msra.mxu0 %v720
    %783 = vmatprep.subr.bf16.mxu0 0
    %784 = vmatpush1.bf16.msra.mxu0 %v721
    %785 = vmatprep.subr.bf16.mxu0 0
    %786 = vmatpush1.bf16.msra.mxu0 %v722
    %787 = vmatprep.subr.bf16.mxu0 0
    %788 = vmatpush1.bf16.msra.mxu0 0
    %789 = vmatprep.subr.bf16.mxu0 0
    %790 = vmatpush1.bf16.msra.mxu0 0
    %791 = vmatprep.subr.bf16.mxu0 0
    %792 = vmatpush1.bf16.msra.mxu0 0
    %793 = vmatprep.subr.bf16.mxu0 0
    %794 = vmatpush1.bf16.msra.mxu0 0
    %795 = vmatprep.subr.bf16.mxu0 0
    %796 = vmatpush1.bf16.msra.mxu0 0
    %797 = vmatprep.subr.bf16.mxu0 0
    %798 = vmatpush1.bf16.msra.mxu0 0
    %799 = vmatprep.subr.bf16.mxu0 0
    %800 = vmatpush1.bf16.msra.mxu0 0
    %801 = vmatprep.subr.bf16.mxu0 0
    %802 = vmatpush1.bf16.msra.mxu0 0
    %803 = vmatprep.mubr.bf16.mxu0 0
    %804 = vmatmul.mubr.bf16.gmra.mrb[0].mxu0 %v755
    %v805 = vpop.f32.mrb[0].mxu0
    %v806 = vadd.f32 0.0, %v805
    %v807 = vpop.f32.mrb[0].mxu0
    %v808 = vpop.f32.mrb[0].mxu0
    %v809 = vadd.f32 0.0, %v808
    %v810 = vpop.f32.mrb[0].mxu0
    %811 = vmatprep.mubr.bf16.mxu0 0
    %812 = vmatmul.mubr.bf16.gmra.mrb[0].mxu0 %v756
    %v813 = vpop.f32.mrb[0].mxu0
    %v814 = vadd.f32 0.0, %v813
    %v815 = vpop.f32.mrb[0].mxu0
    %v816 = vpop.f32.mrb[0].mxu0
    %v817 = vadd.f32 0.0, %v816
    %v818 = vpop.f32.mrb[0].mxu0
    %819 = vmatprep.mubr.bf16.mxu0 0
    %820 = vmatmul.mubr.bf16.gmra.mrb[0].mxu0 %v757
    %v821 = vpop.f32.mrb[0].mxu0
    %v822 = vadd.f32 0.0, %v821
    %v823 = vpop.f32.mrb[0].mxu0
    %v824 = vpop.f32.mrb[0].mxu0
    %v825 = vadd.f32 0.0, %v824
    %v826 = vpop.f32.mrb[0].mxu0
    %827 = vmatprep.mubr.bf16.mxu0 0
    %828 = vmatmul.mubr.bf16.gmra.mrb[0].mxu0 %v758
    %v829 = vpop.f32.mrb[0].mxu0
    %v830 = vadd.f32 0.0, %v829
    %v831 = vpop.f32.mrb[0].mxu0
    %v832 = vpop.f32.mrb[0].mxu0
    %v833 = vadd.f32 0.0, %v832
    %v834 = vpop.f32.mrb[0].mxu0
    %835 = vmatprep.mubr.bf16.mxu0 0
    %836 = vmatmul.mubr.bf16.gmra.mrb[0].mxu0 %v759
    %v837 = vpop.f32.mrb[0].mxu0
    %v838 = vadd.f32 0.0, %v837
    %v839 = vpop.f32.mrb[0].mxu0
    %v840 = vpop.f32.mrb[0].mxu0
    %v841 = vadd.f32 0.0, %v840
    %v842 = vpop.f32.mrb[0].mxu0
    %843 = vmatprep.mubr.bf16.mxu0 0
    %844 = vmatmul.mubr.bf16.gmra.mrb[0].mxu0 %v760
    %v845 = vpop.f32.mrb[0].mxu0
    %v846 = vadd.f32 0.0, %v845
    %v847 = vpop.f32.mrb[0].mxu0
    %v848 = vpop.f32.mrb[0].mxu0
    %v849 = vadd.f32 0.0, %v848
    %v850 = vpop.f32.mrb[0].mxu0
    %851 = vmatprep.mubr.bf16.mxu0 0
    %852 = vmatmul.mubr.bf16.gmra.mrb[0].mxu0 %v761
    %v853 = vpop.f32.mrb[0].mxu0
    %v854 = vadd.f32 0.0, %v853
    %v855 = vpop.f32.mrb[0].mxu0
    %v856 = vpop.f32.mrb[0].mxu0
    %v857 = vadd.f32 0.0, %v856
    %v858 = vpop.f32.mrb[0].mxu0
    %859 = vmatprep.mubr.bf16.mxu0 0
    %860 = vmatmul.mubr.bf16.gmra.mrb[0].mxu0 %v762
    %v861 = vpop.f32.mrb[0].mxu0
    %v862 = vadd.f32 0.0, %v861
    %v863 = vpop.f32.mrb[0].mxu0
    %v864 = vpop.f32.mrb[0].mxu0
    %v865 = vadd.f32 0.0, %v864
    %v866 = vpop.f32.mrb[0].mxu0
    %867 = vdwg.mxu0
    %v868 = vadd.f32 %v682, %v806
    %v869 = vadd.f32 %v683, %v809
    %v870 = vadd.f32 %v684, %v814
    %v871 = vadd.f32 %v685, %v817
    %v872 = vadd.f32 %v686, %v822
    %v873 = vadd.f32 %v687, %v825
    %v874 = vadd.f32 %v688, %v830
    %v875 = vadd.f32 %v689, %v833
    %v876 = vadd.f32 %v690, %v838
    %v877 = vadd.f32 %v691, %v841
    %v878 = vadd.f32 %v692, %v846
    %v879 = vadd.f32 %v693, %v849
    %v880 = vadd.f32 %v694, %v854
    %v881 = vadd.f32 %v695, %v857
    %v882 = vadd.f32 %v696, %v862
    %v883 = vadd.f32 %v697, %v865
    %v884 = vld [vmem:[#allocation8] sm:$0xf]
    %v885 = vld [vmem:[#allocation8 + $0x4] sm:$0xf]
    %v886 = vld [vmem:[#allocation8 + $0x8] sm:$0xf]
    %v887 = vld [vmem:[#allocation8 + $0xc] sm:$0xf]
    %v888 = vld [vmem:[#allocation8 + $0x10] sm:$0xf]
    %v889 = vld [vmem:[#allocation8 + $0x14] sm:$0xf]
    %v890 = vld [vmem:[#allocation8 + $0x18] sm:$0xf]
    %v891 = vld [vmem:[#allocation8 + $0x1c] sm:$0xf]
    %v892 = vld [vmem:[#allocation8 + $0x20] sm:$0xf]
    %v893 = vld [vmem:[#allocation8 + $0x24] sm:$0xf]
    %v894 = vld [vmem:[#allocation8 + $0x28] sm:$0xf]
    %v895 = vld [vmem:[#allocation8 + $0x2c] sm:$0xf]
    %v896 = vld [vmem:[#allocation8 + $0x30] sm:$0xf]
    %v897 = vld [vmem:[#allocation8 + $0x34] sm:$0xf]
    %v898 = vld [vmem:[#allocation8 + $0x38] sm:$0xf]
    %v899 = vld [vmem:[#allocation8 + $0x3c] sm:$0xf]
    %v900 = vpack.c.bf16 %v869, %v868
    %v901 = vpack.c.bf16 %v871, %v870
    %v902 = vpack.c.bf16 %v873, %v872
    %v903 = vpack.c.bf16 %v875, %v874
    %v904 = vpack.c.bf16 %v877, %v876
    %v905 = vpack.c.bf16 %v879, %v878
    %v906 = vpack.c.bf16 %v881, %v880
    %v907 = vpack.c.bf16 %v883, %v882
    %v924 = vunpack.c.l.b16 %v884
    %v925 = vunpack.c.l.b16 %v885
    %v926 = vunpack.c.l.b16 %v886
    %v927 = vunpack.c.l.b16 %v887
    %v928 = vunpack.c.l.b16 %v888
    %v929 = vunpack.c.l.b16 %v889
    %v930 = vunpack.c.l.b16 %v890
    %v931 = vunpack.c.l.b16 %v891
    %v932 = vunpack.c.l.b16 %v892
    %v933 = vunpack.c.l.b16 %v893
    %v934 = vunpack.c.l.b16 %v894
    %v935 = vunpack.c.l.b16 %v895
    %v936 = vunpack.c.l.b16 %v896
    %v937 = vunpack.c.l.b16 %v897
    %v938 = vunpack.c.l.b16 %v898
    %v939 = vunpack.c.l.b16 %v899
    %v940 = vpack.c.b16 %v925, %v924
    %v941 = vpack.c.b16 %v927, %v926
    %v942 = vpack.c.b16 %v929, %v928
    %v943 = vpack.c.b16 %v931, %v930
    %v944 = vpack.c.b16 %v933, %v932
    %v945 = vpack.c.b16 %v935, %v934
    %v946 = vpack.c.b16 %v937, %v936
    %v947 = vpack.c.b16 %v939, %v938
    %956 = vmatprep.subr.bf16.mxu0 0
    %957 = vmatpush1.bf16.msra.mxu0 %v900
    %958 = vmatprep.subr.bf16.mxu0 0
    %959 = vmatpush1.bf16.msra.mxu0 %v901
    %960 = vmatprep.subr.bf16.mxu0 0
    %961 = vmatpush1.bf16.msra.mxu0 %v902
    %962 = vmatprep.subr.bf16.mxu0 0
    %963 = vmatpush1.bf16.msra.mxu0 %v903
    %964 = vmatprep.subr.bf16.mxu0 0
    %965 = vmatpush1.bf16.msra.mxu0 %v904
    %966 = vmatprep.subr.bf16.mxu0 0
    %967 = vmatpush1.bf16.msra.mxu0 %v905
    %968 = vmatprep.subr.bf16.mxu0 0
    %969 = vmatpush1.bf16.msra.mxu0 %v906
    %970 = vmatprep.subr.bf16.mxu0 0
    %971 = vmatpush1.bf16.msra.mxu0 %v907
    %972 = vmatprep.subr.bf16.mxu0 0
    %973 = vmatpush1.bf16.msra.mxu0 0
    %974 = vmatprep.subr.bf16.mxu0 0
    %975 = vmatpush1.bf16.msra.mxu0 0
    %976 = vmatprep.subr.bf16.mxu0 0
    %977 = vmatpush1.bf16.msra.mxu0 0
    %978 = vmatprep.subr.bf16.mxu0 0
    %979 = vmatpush1.bf16.msra.mxu0 0
    %980 = vmatprep.subr.bf16.mxu0 0
    %981 = vmatpush1.bf16.msra.mxu0 0
    %982 = vmatprep.subr.bf16.mxu0 0
    %983 = vmatpush1.bf16.msra.mxu0 0
    %984 = vmatprep.subr.bf16.mxu0 0
    %985 = vmatpush1.bf16.msra.mxu0 0
    %986 = vmatprep.subr.bf16.mxu0 0
    %987 = vmatpush1.bf16.msra.mxu0 0
    %988 = vmatprep.mubr.bf16.mxu0 0
    %989 = vmatmul.mubr.bf16.gmra.mrb[0].mxu0 %v940
    %v990 = vpop.f32.mrb[0].mxu0
    %v991 = vadd.f32 0.0, %v990
    %v992 = vpop.f32.mrb[0].mxu0
    %v993 = vpop.f32.mrb[0].mxu0
    %v994 = vadd.f32 0.0, %v993
    %v995 = vpop.f32.mrb[0].mxu0
    %996 = vmatprep.mubr.bf16.mxu0 0
    %997 = vmatmul.mubr.bf16.gmra.mrb[0].mxu0 %v941
    %v998 = vpop.f32.mrb[0].mxu0
    %v999 = vadd.f32 0.0, %v998
    %v1000 = vpop.f32.mrb[0].mxu0
    %v1001 = vpop.f32.mrb[0].mxu0
    %v1002 = vadd.f32 0.0, %v1001
    %v1003 = vpop.f32.mrb[0].mxu0
    %1004 = vmatprep.mubr.bf16.mxu0 0
    %1005 = vmatmul.mubr.bf16.gmra.mrb[0].mxu0 %v942
    %v1006 = vpop.f32.mrb[0].mxu0
    %v1007 = vadd.f32 0.0, %v1006
    %v1008 = vpop.f32.mrb[0].mxu0
    %v1009 = vpop.f32.mrb[0].mxu0
    %v1010 = vadd.f32 0.0, %v1009
    %v1011 = vpop.f32.mrb[0].mxu0
    %1012 = vmatprep.mubr.bf16.mxu0 0
    %1013 = vmatmul.mubr.bf16.gmra.mrb[0].mxu0 %v943
    %v1014 = vpop.f32.mrb[0].mxu0
    %v1015 = vadd.f32 0.0, %v1014
    %v1016 = vpop.f32.mrb[0].mxu0
    %v1017 = vpop.f32.mrb[0].mxu0
    %v1018 = vadd.f32 0.0, %v1017
    %v1019 = vpop.f32.mrb[0].mxu0
    %1020 = vmatprep.mubr.bf16.mxu0 0
    %1021 = vmatmul.mubr.bf16.gmra.mrb[0].mxu0 %v944
    %v1022 = vpop.f32.mrb[0].mxu0
    %v1023 = vadd.f32 0.0, %v1022
    %v1024 = vpop.f32.mrb[0].mxu0
    %v1025 = vpop.f32.mrb[0].mxu0
    %v1026 = vadd.f32 0.0, %v1025
    %v1027 = vpop.f32.mrb[0].mxu0
    %1028 = vmatprep.mubr.bf16.mxu0 0
    %1029 = vmatmul.mubr.bf16.gmra.mrb[0].mxu0 %v945
    %v1030 = vpop.f32.mrb[0].mxu0
    %v1031 = vadd.f32 0.0, %v1030
    %v1032 = vpop.f32.mrb[0].mxu0
    %v1033 = vpop.f32.mrb[0].mxu0
    %v1034 = vadd.f32 0.0, %v1033
    %v1035 = vpop.f32.mrb[0].mxu0
    %1036 = vmatprep.mubr.bf16.mxu0 0
    %1037 = vmatmul.mubr.bf16.gmra.mrb[0].mxu0 %v946
    %v1038 = vpop.f32.mrb[0].mxu0
    %v1039 = vadd.f32 0.0, %v1038
    %v1040 = vpop.f32.mrb[0].mxu0
    %v1041 = vpop.f32.mrb[0].mxu0
    %v1042 = vadd.f32 0.0, %v1041
    %v1043 = vpop.f32.mrb[0].mxu0
    %1044 = vmatprep.mubr.bf16.mxu0 0
    %1045 = vmatmul.mubr.bf16.gmra.mrb[0].mxu0 %v947
    %v1046 = vpop.f32.mrb[0].mxu0
    %v1047 = vadd.f32 0.0, %v1046
    %v1048 = vpop.f32.mrb[0].mxu0
    %v1049 = vpop.f32.mrb[0].mxu0
    %v1050 = vadd.f32 0.0, %v1049
    %v1051 = vpop.f32.mrb[0].mxu0
    %1052 = vdwg.mxu0
    %v1053 = vld [vmem:[#allocation7] sm:$0xf]
    %v1054 = vld [vmem:[#allocation7 + $0x4] sm:$0xf]
    %v1055 = vld [vmem:[#allocation7 + $0x8] sm:$0xf]
    %v1056 = vld [vmem:[#allocation7 + $0xc] sm:$0xf]
    %v1057 = vld [vmem:[#allocation7 + $0x10] sm:$0xf]
    %v1058 = vld [vmem:[#allocation7 + $0x14] sm:$0xf]
    %v1059 = vld [vmem:[#allocation7 + $0x18] sm:$0xf]
    %v1060 = vld [vmem:[#allocation7 + $0x1c] sm:$0xf]
    %v1061 = vld [vmem:[#allocation7 + $0x20] sm:$0xf]
    %v1062 = vld [vmem:[#allocation7 + $0x24] sm:$0xf]
    %v1063 = vld [vmem:[#allocation7 + $0x28] sm:$0xf]
    %v1064 = vld [vmem:[#allocation7 + $0x2c] sm:$0xf]
    %v1065 = vld [vmem:[#allocation7 + $0x30] sm:$0xf]
    %v1066 = vld [vmem:[#allocation7 + $0x34] sm:$0xf]
    %v1067 = vld [vmem:[#allocation7 + $0x38] sm:$0xf]
    %v1068 = vld [vmem:[#allocation7 + $0x3c] sm:$0xf]
    %v1069 = vpack.c.bf16 %v994, %v991
    %v1070 = vpack.c.bf16 %v1002, %v999
    %v1071 = vpack.c.bf16 %v1010, %v1007
    %v1072 = vpack.c.bf16 %v1018, %v1015
    %v1073 = vpack.c.bf16 %v1026, %v1023
    %v1074 = vpack.c.bf16 %v1034, %v1031
    %v1075 = vpack.c.bf16 %v1042, %v1039
    %v1076 = vpack.c.bf16 %v1050, %v1047
    %v1077 = vld [vmem:[%s6] sm:$0x1]
    %v1079 = vlaneseq
    %v1080 = vshrl.u32 %v1079, 7
    %v1081 = vsub.s32 0, %v1080
    %v1082 = vrot.slane %v1077, %v1081
    %v1100 = vunpack.c.l.b16 %v1053
    %v1101 = vunpack.c.l.b16 %v1054
    %v1102 = vunpack.c.l.b16 %v1055
    %v1103 = vunpack.c.l.b16 %v1056
    %v1104 = vunpack.c.l.b16 %v1057
    %v1105 = vunpack.c.l.b16 %v1058
    %v1106 = vunpack.c.l.b16 %v1059
    %v1107 = vunpack.c.l.b16 %v1060
    %v1108 = vunpack.c.l.b16 %v1061
    %v1109 = vunpack.c.l.b16 %v1062
    %v1110 = vunpack.c.l.b16 %v1063
    %v1111 = vunpack.c.l.b16 %v1064
    %v1112 = vunpack.c.l.b16 %v1065
    %v1113 = vunpack.c.l.b16 %v1066
    %v1114 = vunpack.c.l.b16 %v1067
    %v1115 = vunpack.c.l.b16 %v1068
    %v1116 = vpack.c.b16 %v1101, %v1100
    %v1117 = vpack.c.b16 %v1103, %v1102
    %v1118 = vpack.c.b16 %v1105, %v1104
    %v1119 = vpack.c.b16 %v1107, %v1106
    %v1120 = vpack.c.b16 %v1109, %v1108
    %v1121 = vpack.c.b16 %v1111, %v1110
    %v1122 = vpack.c.b16 %v1113, %v1112
    %v1123 = vpack.c.b16 %v1115, %v1114
    %1132 = vmatprep.subr.bf16.mxu0 0
    %1133 = vmatpush1.bf16.msra.mxu0 %v1069
    %1134 = vmatprep.subr.bf16.mxu0 0
    %1135 = vmatpush1.bf16.msra.mxu0 %v1070
    %1136 = vmatprep.subr.bf16.mxu0 0
    %1137 = vmatpush1.bf16.msra.mxu0 %v1071
    %1138 = vmatprep.subr.bf16.mxu0 0
    %1139 = vmatpush1.bf16.msra.mxu0 %v1072
    %1140 = vmatprep.subr.bf16.mxu0 0
    %1141 = vmatpush1.bf16.msra.mxu0 %v1073
    %1142 = vmatprep.subr.bf16.mxu0 0
    %1143 = vmatpush1.bf16.msra.mxu0 %v1074
    %1144 = vmatprep.subr.bf16.mxu0 0
    %1145 = vmatpush1.bf16.msra.mxu0 %v1075
    %1146 = vmatprep.subr.bf16.mxu0 0
    %1147 = vmatpush1.bf16.msra.mxu0 %v1076
    %1148 = vmatprep.subr.bf16.mxu0 0
    %1149 = vmatpush1.bf16.msra.mxu0 0
    %1150 = vmatprep.subr.bf16.mxu0 0
    %1151 = vmatpush1.bf16.msra.mxu0 0
    %1152 = vmatprep.subr.bf16.mxu0 0
    %1153 = vmatpush1.bf16.msra.mxu0 0
    %1154 = vmatprep.subr.bf16.mxu0 0
    %1155 = vmatpush1.bf16.msra.mxu0 0
    %1156 = vmatprep.subr.bf16.mxu0 0
    %1157 = vmatpush1.bf16.msra.mxu0 0
    %1158 = vmatprep.subr.bf16.mxu0 0
    %1159 = vmatpush1.bf16.msra.mxu0 0
    %1160 = vmatprep.subr.bf16.mxu0 0
    %1161 = vmatpush1.bf16.msra.mxu0 0
    %1162 = vmatprep.subr.bf16.mxu0 0
    %1163 = vmatpush1.bf16.msra.mxu0 0
    %1164 = vmatprep.mubr.bf16.mxu0 0
    %1165 = vmatmul.mubr.bf16.gmra.mrb[0].mxu0 %v1116
    %v1166 = vpop.f32.mrb[0].mxu0
    %v1167 = vadd.f32 %v1082, %v1166
    %v1168 = vpop.f32.mrb[0].mxu0
    %v1169 = vpop.f32.mrb[0].mxu0
    %v1170 = vadd.f32 %v1082, %v1169
    %v1171 = vpop.f32.mrb[0].mxu0
    %1172 = vmatprep.mubr.bf16.mxu0 0
    %1173 = vmatmul.mubr.bf16.gmra.mrb[0].mxu0 %v1117
    %v1174 = vpop.f32.mrb[0].mxu0
    %v1175 = vadd.f32 %v1082, %v1174
    %v1176 = vpop.f32.mrb[0].mxu0
    %v1177 = vpop.f32.mrb[0].mxu0
    %v1178 = vadd.f32 %v1082, %v1177
    %v1179 = vpop.f32.mrb[0].mxu0
    %1180 = vmatprep.mubr.bf16.mxu0 0
    %1181 = vmatmul.mubr.bf16.gmra.mrb[0].mxu0 %v1118
    %v1182 = vpop.f32.mrb[0].mxu0
    %v1183 = vadd.f32 %v1082, %v1182
    %v1184 = vpop.f32.mrb[0].mxu0
    %v1185 = vpop.f32.mrb[0].mxu0
    %v1186 = vadd.f32 %v1082, %v1185
    %v1187 = vpop.f32.mrb[0].mxu0
    %1188 = vmatprep.mubr.bf16.mxu0 0
    %1189 = vmatmul.mubr.bf16.gmra.mrb[0].mxu0 %v1119
    %v1190 = vpop.f32.mrb[0].mxu0
    %v1191 = vadd.f32 %v1082, %v1190
    %v1192 = vpop.f32.mrb[0].mxu0
    %v1193 = vpop.f32.mrb[0].mxu0
    %v1194 = vadd.f32 %v1082, %v1193
    %v1195 = vpop.f32.mrb[0].mxu0
    %1196 = vmatprep.mubr.bf16.mxu0 0
    %1197 = vmatmul.mubr.bf16.gmra.mrb[0].mxu0 %v1120
    %v1198 = vpop.f32.mrb[0].mxu0
    %v1199 = vadd.f32 %v1082, %v1198
    %v1200 = vpop.f32.mrb[0].mxu0
    %v1201 = vpop.f32.mrb[0].mxu0
    %v1202 = vadd.f32 %v1082, %v1201
    %v1203 = vpop.f32.mrb[0].mxu0
    %1204 = vmatprep.mubr.bf16.mxu0 0
    %1205 = vmatmul.mubr.bf16.gmra.mrb[0].mxu0 %v1121
    %v1206 = vpop.f32.mrb[0].mxu0
    %v1207 = vadd.f32 %v1082, %v1206
    %v1208 = vpop.f32.mrb[0].mxu0
    %v1209 = vpop.f32.mrb[0].mxu0
    %v1210 = vadd.f32 %v1082, %v1209
    %v1211 = vpop.f32.mrb[0].mxu0
    %1212 = vmatprep.mubr.bf16.mxu0 0
    %1213 = vmatmul.mubr.bf16.gmra.mrb[0].mxu0 %v1122
    %v1214 = vpop.f32.mrb[0].mxu0
    %v1215 = vadd.f32 %v1082, %v1214
    %v1216 = vpop.f32.mrb[0].mxu0
    %v1217 = vpop.f32.mrb[0].mxu0
    %v1218 = vadd.f32 %v1082, %v1217
    %v1219 = vpop.f32.mrb[0].mxu0
    %1220 = vmatprep.mubr.bf16.mxu0 0
    %1221 = vmatmul.mubr.bf16.gmra.mrb[0].mxu0 %v1123
    %v1222 = vpop.f32.mrb[0].mxu0
    %v1223 = vadd.f32 %v1082, %v1222
    %v1224 = vpop.f32.mrb[0].mxu0
    %v1225 = vpop.f32.mrb[0].mxu0
    %v1226 = vadd.f32 %v1082, %v1225
    %v1227 = vpop.f32.mrb[0].mxu0
    %1228 = vdwg.mxu0
    %vm1229 = vcmp.ge.f32.partialorder %v1167, 0.0
    %vm1230 = vcmp.ge.f32.partialorder %v1170, 0.0
    %vm1231 = vcmp.ge.f32.partialorder %v1175, 0.0
    %vm1232 = vcmp.ge.f32.partialorder %v1178, 0.0
    %vm1233 = vcmp.ge.f32.partialorder %v1183, 0.0
    %vm1234 = vcmp.ge.f32.partialorder %v1186, 0.0
    %vm1235 = vcmp.ge.f32.partialorder %v1191, 0.0
    %vm1236 = vcmp.ge.f32.partialorder %v1194, 0.0
    %vm1237 = vcmp.ge.f32.partialorder %v1199, 0.0
    %vm1238 = vcmp.ge.f32.partialorder %v1202, 0.0
    %vm1239 = vcmp.ge.f32.partialorder %v1207, 0.0
    %vm1240 = vcmp.ge.f32.partialorder %v1210, 0.0
    %vm1241 = vcmp.ge.f32.partialorder %v1215, 0.0
    %vm1242 = vcmp.ge.f32.partialorder %v1218, 0.0
    %vm1243 = vcmp.ge.f32.partialorder %v1223, 0.0
    %vm1244 = vcmp.ge.f32.partialorder %v1226, 0.0
    %v1245 = vmul.f32 %v1167, 0.01
    %v1246 = vmul.f32 %v1170, 0.01
    %v1247 = vmul.f32 %v1175, 0.01
    %v1248 = vmul.f32 %v1178, 0.01
    %v1249 = vmul.f32 %v1183, 0.01
    %v1250 = vmul.f32 %v1186, 0.01
    %v1251 = vmul.f32 %v1191, 0.01
    %v1252 = vmul.f32 %v1194, 0.01
    %v1253 = vmul.f32 %v1199, 0.01
    %v1254 = vmul.f32 %v1202, 0.01
    %v1255 = vmul.f32 %v1207, 0.01
    %v1256 = vmul.f32 %v1210, 0.01
    %v1257 = vmul.f32 %v1215, 0.01
    %v1258 = vmul.f32 %v1218, 0.01
    %v1259 = vmul.f32 %v1223, 0.01
    %v1260 = vmul.f32 %v1226, 0.01
    %v1261 = vsel %vm1229, %v1167, %v1245
    %v1262 = vsel %vm1230, %v1170, %v1246
    %v1263 = vsel %vm1231, %v1175, %v1247
    %v1264 = vsel %vm1232, %v1178, %v1248
    %v1265 = vsel %vm1233, %v1183, %v1249
    %v1266 = vsel %vm1234, %v1186, %v1250
    %v1267 = vsel %vm1235, %v1191, %v1251
    %v1268 = vsel %vm1236, %v1194, %v1252
    %v1269 = vsel %vm1237, %v1199, %v1253
    %v1270 = vsel %vm1238, %v1202, %v1254
    %v1271 = vsel %vm1239, %v1207, %v1255
    %v1272 = vsel %vm1240, %v1210, %v1256
    %v1273 = vsel %vm1241, %v1215, %v1257
    %v1274 = vsel %vm1242, %v1218, %v1258
    %v1275 = vsel %vm1243, %v1223, %v1259
    %v1276 = vsel %vm1244, %v1226, %v1260
    %v1277 = vpack.c.bf16 %v1262, %v1261
    %v1278 = vpack.c.bf16 %v1264, %v1263
    %v1279 = vpack.c.bf16 %v1266, %v1265
    %v1280 = vpack.c.bf16 %v1268, %v1267
    %v1281 = vpack.c.bf16 %v1270, %v1269
    %v1282 = vpack.c.bf16 %v1272, %v1271
    %v1283 = vpack.c.bf16 %v1274, %v1273
    %v1284 = vpack.c.bf16 %v1276, %v1275
    %v1293 = vunpack.c.l.b16 %v1277
    %v1294 = vunpack.c.h.b16 %v1277
    %v1295 = vunpack.c.l.b16 %v1278
    %v1296 = vunpack.c.h.b16 %v1278
    %v1297 = vunpack.c.l.b16 %v1279
    %v1298 = vunpack.c.h.b16 %v1279
    %v1299 = vunpack.c.l.b16 %v1280
    %v1300 = vunpack.c.h.b16 %v1280
    %v1301 = vunpack.c.l.b16 %v1281
    %v1302 = vunpack.c.h.b16 %v1281
    %v1303 = vunpack.c.l.b16 %v1282
    %v1304 = vunpack.c.h.b16 %v1282
    %v1305 = vunpack.c.l.b16 %v1283
    %v1306 = vunpack.c.h.b16 %v1283
    %v1307 = vunpack.c.l.b16 %v1284
    %v1308 = vunpack.c.h.b16 %v1284
    %v1309 = vpack.c.b16 %v1293, %v1293
    %v1310 = vpack.c.b16 %v1294, %v1294
    %v1311 = vpack.c.b16 %v1295, %v1295
    %v1312 = vpack.c.b16 %v1296, %v1296
    %v1313 = vpack.c.b16 %v1297, %v1297
    %v1314 = vpack.c.b16 %v1298, %v1298
    %v1315 = vpack.c.b16 %v1299, %v1299
    %v1316 = vpack.c.b16 %v1300, %v1300
    %v1317 = vpack.c.b16 %v1301, %v1301
    %v1318 = vpack.c.b16 %v1302, %v1302
    %v1319 = vpack.c.b16 %v1303, %v1303
    %v1320 = vpack.c.b16 %v1304, %v1304
    %v1321 = vpack.c.b16 %v1305, %v1305
    %v1322 = vpack.c.b16 %v1306, %v1306
    %v1323 = vpack.c.b16 %v1307, %v1307
    %v1324 = vpack.c.b16 %v1308, %v1308
    %1341 = vst [vmem:[#allocation11] sm:$0xf] %v1309
    %1342 = vst [vmem:[#allocation11 + $0x4] sm:$0xf] %v1310
    %1343 = vst [vmem:[#allocation11 + $0x8] sm:$0xf] %v1311
    %1344 = vst [vmem:[#allocation11 + $0xc] sm:$0xf] %v1312
    %1345 = vst [vmem:[#allocation11 + $0x10] sm:$0xf] %v1313
    %1346 = vst [vmem:[#allocation11 + $0x14] sm:$0xf] %v1314
    %1347 = vst [vmem:[#allocation11 + $0x18] sm:$0xf] %v1315
    %1348 = vst [vmem:[#allocation11 + $0x1c] sm:$0xf] %v1316
    %1349 = vst [vmem:[#allocation11 + $0x20] sm:$0xf] %v1317
    %1350 = vst [vmem:[#allocation11 + $0x24] sm:$0xf] %v1318
    %1351 = vst [vmem:[#allocation11 + $0x28] sm:$0xf] %v1319
    %1352 = vst [vmem:[#allocation11 + $0x2c] sm:$0xf] %v1320
    %1353 = vst [vmem:[#allocation11 + $0x30] sm:$0xf] %v1321
    %1354 = vst [vmem:[#allocation11 + $0x34] sm:$0xf] %v1322
    %1355 = vst [vmem:[#allocation11 + $0x38] sm:$0xf] %v1323
    %1356 = vst [vmem:[#allocation11 + $0x3c] sm:$0xf] %v1324
    // Predicated region
    $region50: #{tpu_custom_call.1} parent=1 // pred_check
      _
    $region51: #{tpu_custom_call.1} parent=1 // pred_check_branch
      %1358 = sbr.rel (0) target = $region53
    $region52: #{tpu_custom_call.1} parent=1 // pred_region
      %s1360 = ssub.s32 1024, 1024
      %1361 = vsyncadd [#allocation4], %s1360
      %s1362 = sshll.u32 [#allocation11], 4
      %s1363 = int_to_ptr.vmem [resolvable:$true] %s1362
      %1368 = dma.vmem_to_hbm [thread:$0]  %s1363, 1024, %s7, [#allocation4], 64, 64, 4
    $region53: #{tpu_custom_call.1} parent=1 // pred_fallthru
      _
    // Predicated region
    $region54: #{tpu_custom_call.1} parent=1 // pred_check
      _
    $region55: #{tpu_custom_call.1} parent=1 // pred_check_branch
      %1370 = sbr.rel (0) target = $region57
    $region56: #{tpu_custom_call.1} parent=1 // pred_region
      %1371 = dma.done [#allocation4], 1024
    $region57: #{tpu_custom_call.1} parent=1 // pred_fallthru
      _
    %1372 = vsyncpa [#allocation3], 1
    %1373 = vsyncpa [#allocation6], 1
    %1374 = vsyncpa [#allocation9], 1
    %1375 = vsyncpa [#allocation4], 1

</llo_original>
